<compile_context>
chip_gen: v7x
topology: tpu7x:2x2x1
jax: 0.10.0
libtpu: 0.0.40
codegen_flags: <defaults>
</compile_context>

<pallas_src>
import jax
import jax.numpy as jnp
from jax import lax
from jax.experimental import pallas as pl
from jax.experimental.pallas import tpu as pltpu


def _round_up(x, m):
    return (x + m - 1) // m * m


def _make_upconv_kernel(n_mlp1, n_mlp2, nsample, tn1, n2p, mm_dtype):
    """Kernel factory.

    rest[:-1] parameter layout (all 2-D, Conv+BN folded in eval mode):
      [0] W_pos (3, Cg)   position rows of mlp1 layer 0 (or [0 | I3] if no mlp1)
      [1] b1    (1, Cg)   bias of mlp1 layer 0 (or zeros if no mlp1)
      then (W (Cin,Cout), b (1,Cout)) for each remaining mlp1 layer,
      then MLP2 in channel-major (pre-transposed) form:
        n_mlp2 == 0 : eye(Cskip)  (transpose-by-matmul helper)
        n_mlp2 >= 1 : W2a_t (C0,Cskip), W2b_t (C0,C1), b2 (C0,1),
                      then (W_t (Ci+1,Ci), b (Ci+1,1)) for remaining layers.
    """
    n_rest1 = max(n_mlp1 - 1, 0)
    nbits = max(1, (n2p - 1).bit_length())
    low_mask = (1 << nbits) - 1

    def mm(a, b):                       # standard MXU matmul, f32 accumulation
        return jnp.dot(a.astype(mm_dtype), b.astype(mm_dtype),
                       preferred_element_type=jnp.float32)

    def mm_rT(a, b):                    # a @ b.T (rhs-transposed), f32 accumulation
        return lax.dot_general(a.astype(mm_dtype), b.astype(mm_dtype),
                               (((1,), (1,)), ((), ())),
                               preferred_element_type=jnp.float32)

    def kernel(xyz1_ref, xyz2t_ref, feat1_ref, z2_ref, *rest):
        out_ref = rest[-1]
        prm = rest[:-1]

        xyz1 = xyz1_ref[0]        # (TN1, 3)   f32
        xyz2_t = xyz2t_ref[0]     # (3, N2p)   f32, padded columns = 1e6 sentinel
        z2 = z2_ref[0]            # (N2p, Cg)  hoisted per-source-point term

        # ---- pairwise squared distances (VPU, lane dim = N2p) -------------------
        dx = xyz1[:, 0:1] - xyz2_t[0:1, :]
        dy = xyz1[:, 1:2] - xyz2_t[1:2, :]
        dz = xyz1[:, 2:3] - xyz2_t[2:3, :]
        d = dx * dx + dy * dy + dz * dz                      # (TN1, N2p) f32 >= 0

        # ---- combined (distance | lane-index) key: single int-min per selection --
        iota = lax.broadcasted_iota(jnp.int32, (tn1, n2p), 1)
        dkey = (pltpu.bitcast(d, jnp.int32) & jnp.int32(~low_mask)) | iota
        excl = jnp.int32(2**31 - 1)                          # > any finite-d key

        # ---- per-target-row term q1 = b1 - xyz1 @ W_pos (VPU broadcast FMAs) -----
        w_pos = prm[0][...]                                  # (3, Cg)
        b1 = prm[1][...]                                     # (1, Cg)
        q1 = b1 - (xyz1[:, 0:1] * w_pos[0:1, :]
                   + xyz1[:, 1:2] * w_pos[1:2, :]
                   + xyz1[:, 2:3] * w_pos[2:3, :])           # (TN1, Cg) f32

        rest1 = [(prm[2 + 2 * i][...], prm[3 + 2 * i][...]) for i in range(n_rest1)]

        # ---- KNN selection interleaved with per-k gather matmul + MLP1 ----------
        max_acc = None
        for _ in range(nsample):                             # nsample small & static
            kmin = jnp.min(dkey, axis=1, keepdims=True)      # (TN1, 1)
            first = kmin & jnp.int32(low_mask)               # first-occurrence argmin
            sel = iota == first                              # exact one-hot rows
            dkey = jnp.where(sel, excl, dkey)                # exclude picked point
            onehot = jnp.where(sel, 1.0, 0.0).astype(mm_dtype)
            h = mm(onehot, z2) + q1                          # gather + layer-0 bias
            if n_mlp1 >= 1:
                h = jnp.maximum(h, 0.0)
            for w, b in rest1:                               # remaining mlp1 layers
                h = jnp.maximum(mm(h, w) + b, 0.0)
            max_acc = h if max_acc is None else jnp.maximum(max_acc, h)

        # ---- MLP2 with fused skip-concat, channel-major (Cout, TN1) output ------
        feat1_n = feat1_ref[0]                               # (C1, TN1)
        pi = 2 + 2 * n_rest1
        if n_mlp2 == 0:
            eye = prm[pi][...]                               # (Cskip, Cskip)
            top = lax.dot_general(eye, max_acc, (((1,), (1,)), ((), ())),
                                  preferred_element_type=jnp.float32)
            out_t = jnp.concatenate([top, feat1_n], axis=0)
        else:
            w2a_t = prm[pi][...]                             # (C0, Cskip)
            w2b_t = prm[pi + 1][...]                         # (C0, C1)
            b2 = prm[pi + 2][...]                            # (C0, 1)
            h2 = jnp.maximum(mm_rT(w2a_t, max_acc) + mm(w2b_t, feat1_n) + b2, 0.0)
            for i in range(n_mlp2 - 1):
                w = prm[pi + 3 + 2 * i][...]                 # (Ci+1, Ci)
                b = prm[pi + 4 + 2 * i][...]                 # (Ci+1, 1)
                h2 = jnp.maximum(mm(w, h2) + b, 0.0)
            out_t = h2

        out_ref[0] = out_t.astype(out_ref.dtype)             # lane-dense (Cout, TN1)

    return kernel


def pointnet_set_upconv(xyz1, xyz2, feat1, feat2, mlp1_params, mlp2_params, nsample,
                        *, tile_n1=128, matmul_dtype=jnp.bfloat16,
                        out_dtype=jnp.float32):
    """xyz1:(B,N1,3) xyz2:(B,N2,3) feat1:(B,C1,N1) feat2:(B,C2,N2) -> (B,Cout,N1)."""
    B, N1, _ = xyz1.shape
    _, N2, _ = xyz2.shape
    C1 = feat1.shape[1]
    C2 = feat2.shape[1]
    if nsample > N2:
        raise ValueError("nsample must be <= number of source points (N2)")

    f32 = jnp.float32
    xyz1 = xyz1.astype(f32)
    xyz2 = xyz2.astype(f32)
    feat1 = feat1.astype(f32)
    feat2 = feat2.astype(f32)

    # ---- tile / pad sizes (lane & sublane aligned) ------------------------------
    if _round_up(N1, 8) <= tile_n1:
        tn1 = _round_up(N1, 8)            # single tile, full (padded) N1
    else:
        tn1 = _round_up(tile_n1, 128)     # multi-tile: tile must be a 128-multiple
    n1p = _round_up(N1, tn1)
    n2p = _round_up(N2, 128)

    if n1p != N1:
        xyz1 = jnp.pad(xyz1, ((0, 0), (0, n1p - N1), (0, 0)))
        feat1 = jnp.pad(feat1, ((0, 0), (0, 0), (0, n1p - N1)))

    # Padded source points: far-away sentinel for the distance computation (never
    # selected), zero padding for the hoisted z2 term (never gathered).
    xyz2_sent_t = jnp.transpose(xyz2, (0, 2, 1))              # (B, 3, N2)
    xyz2_zero = xyz2
    feat2_zero = feat2
    if n2p != N2:
        xyz2_sent_t = jnp.pad(xyz2_sent_t, ((0, 0), (0, 0), (0, n2p - N2)),
                              constant_values=1e6)
        xyz2_zero = jnp.pad(xyz2, ((0, 0), (0, n2p - N2), (0, 0)))
        feat2_zero = jnp.pad(feat2, ((0, 0), (0, 0), (0, n2p - N2)))

    n_mlp1 = len(mlp1_params)
    n_mlp2 = len(mlp2_params)

    # ---- hoisted per-source-point term z2[b,j] = feat2[b,:,j]@W_feat + xyz2[b,j]@W_pos
    if n_mlp1 >= 1:
        w0 = jnp.asarray(mlp1_params[0][0], f32)              # (C2+3, Cg)
        b0 = jnp.asarray(mlp1_params[0][1], f32)              # (1, Cg)
        w0f, w0p = w0[:C2, :], w0[C2:, :]
        z2 = (jnp.einsum('bcj,cm->bjm', feat2_zero, w0f)
              + jnp.einsum('bjc,cm->bjm', xyz2_zero, w0p))    # (B, N2p, Cg)
        cg = w0.shape[1]
        w_pos_eff, b1_eff = w0p, b0
        cskip = jnp.asarray(mlp1_params[-1][0]).shape[1]
    else:
        # No MLP1: the "gathered feature" is just [feat2, xyz2 - xyz1].
        z2 = jnp.concatenate(
            [jnp.transpose(feat2_zero, (0, 2, 1)), xyz2_zero], axis=-1)
        cg = C2 + 3
        w_pos_eff = jnp.concatenate(
            [jnp.zeros((3, C2), f32), jnp.eye(3, dtype=f32)], axis=1)
        b1_eff = jnp.zeros((1, cg), f32)
        cskip = cg
    z2 = z2.astype(matmul_dtype)

    # ---- flatten weights; MLP2 pre-transposed to channel-major form -------------
    flat = [w_pos_eff, b1_eff]
    for w, b in mlp1_params[1:]:
        flat += [jnp.asarray(w, f32), jnp.asarray(b, f32)]
    if n_mlp2 == 0:
        flat.append(jnp.eye(cskip, dtype=f32))
        c_out = cskip + C1
    else:
        w0 = jnp.asarray(mlp2_params[0][0], f32)               # (Cskip+C1, C0)
        b0 = jnp.asarray(mlp2_params[0][1], f32)               # (1, C0)
        flat += [jnp.transpose(w0[:cskip, :]), jnp.transpose(w0[cskip:, :]),
                 jnp.transpose(b0)]
        for w, b in mlp2_params[1:]:
            flat += [jnp.transpose(jnp.asarray(w, f32)),
                     jnp.transpose(jnp.asarray(b, f32))]
        c_out = jnp.asarray(mlp2_params[-1][0]).shape[1]
    flat = [jnp.asarray(x, f32) for x in flat]

    grid = (B, n1p // tn1)
    data_specs = [
        pl.BlockSpec((1, tn1, 3), lambda b, t: (b, t, 0)),     # xyz1 tile
        pl.BlockSpec((1, 3, n2p), lambda b, t: (b, 0, 0)),     # xyz2 (sentinel, transposed)
        pl.BlockSpec((1, C1, tn1), lambda b, t: (b, 0, t)),    # feat1, native layout
        pl.BlockSpec((1, n2p, cg), lambda b, t: (b, 0, 0)),    # hoisted z2 (per batch)
    ]
    param_specs = [pl.BlockSpec(x.shape, lambda b, t: (0, 0)) for x in flat]
    out_spec = pl.BlockSpec((1, c_out, tn1), lambda b, t: (b, 0, t))

    kernel = _make_upconv_kernel(n_mlp1, n_mlp2, nsample, tn1, n2p, matmul_dtype)

    out = pl.pallas_call(
        kernel,
        out_shape=jax.ShapeDtypeStruct((B, c_out, n1p), out_dtype),
        grid_spec=pltpu.PrefetchScalarGridSpec(
            num_scalar_prefetch=0,
            grid=grid,
            in_specs=data_specs + param_specs,
            out_specs=out_spec,
        ),
        compiler_params=pltpu.CompilerParams(
            dimension_semantics=("parallel", "parallel"),
            vmem_limit_bytes=48 * 1024 * 1024,
        ),
    )(xyz1, xyz2_sent_t, feat1, z2, *flat)

    return out[:, :, :N1] if n1p != N1 else out


def init_params(key, f1_channel, f2_channel, mlp, mlp2, eps=1e-5):
    """Deterministic synthetic params; Conv(1x1, no bias) + eval-mode BN folded to (W, bias)."""
    def make_layer(k, cin, cout):
        k1, k2, k3, k4, k5 = jax.random.split(k, 5)
        w = jax.random.normal(k1, (cin, cout), jnp.float32) * 0.3
        gamma = jax.random.uniform(k2, (cout,), jnp.float32, 0.5, 1.5)
        beta = jax.random.normal(k3, (cout,), jnp.float32) * 0.1
        mean = jax.random.normal(k4, (cout,), jnp.float32) * 0.1
        var = jax.random.uniform(k5, (cout,), jnp.float32, 0.5, 1.5)
        scale = gamma / jnp.sqrt(var + eps)
        shift = beta - mean * scale
        return w * scale[None, :], shift[None, :]

    mlp1_params, mlp2_params = [], []
    last = f2_channel + 3
    for c in mlp:
        key, sub = jax.random.split(key)
        mlp1_params.append(make_layer(sub, last, c))
        last = c
    last = (mlp[-1] if mlp else f2_channel + 3) + f1_channel
    for c in mlp2:
        key, sub = jax.random.split(key)
        mlp2_params.append(make_layer(sub, last, c))
        last = c
    return mlp1_params, mlp2_params


def reference_forward(xyz1, xyz2, feat1, feat2, mlp1_params, mlp2_params, nsample):
    """Pure-JAX reference of the PyTorch forward (eval-mode BN)."""
    def one(x1, x2, f1t, f2t):
        d = jnp.sum((x1[:, None, :] - x2[None, :, :]) ** 2, axis=-1)
        idx = lax.top_k(-d, nsample)[1]                       # (N1, K) nearest in xyz2
        g_xyz = x2[idx]                                       # (N1, K, 3)
        g_feat = f2t[idx]                                     # (N1, K, C2)
        h = jnp.concatenate([g_feat, g_xyz - x1[:, None, :]], axis=-1)
        for w, b in mlp1_params:
            h = jax.nn.relu(h @ w + b)
        h = jnp.max(h, axis=1)
        h = jnp.concatenate([h, f1t], axis=-1)
        for w, b in mlp2_params:
            h = jax.nn.relu(h @ w + b)
        return h
    f1t = jnp.transpose(feat1, (0, 2, 1))
    f2t = jnp.transpose(feat2, (0, 2, 1))
    out = jax.vmap(one)(xyz1, xyz2, f1t, f2t)
    return jnp.transpose(out, (0, 2, 1))


if __name__ == "__main__":
    B, N1, N2 = 2, 16, 8
    C1, C2 = 4, 4
    nsample = 4
    mlp = [16, 32]
    mlp2 = [32]

    key = jax.random.PRNGKey(0)
    k1, k2, k3, k4, kp = jax.random.split(key, 5)
    xyz1 = jax.random.normal(k1, (B, N1, 3), jnp.float32)
    xyz2 = jax.random.normal(k2, (B, N2, 3), jnp.float32)
    feat1 = jax.random.normal(k3, (B, C1, N1), jnp.float32)
    feat2 = jax.random.normal(k4, (B, C2, N2), jnp.float32)

    mlp1_params, mlp2_params = init_params(kp, C1, C2, mlp, mlp2)
    ref = reference_forward(xyz1, xyz2, feat1, feat2, mlp1_params, mlp2_params, nsample)

    # f32 MXU-operand path (tight check).
    out = pointnet_set_upconv(xyz1, xyz2, feat1, feat2, mlp1_params, mlp2_params,
                              nsample, matmul_dtype=jnp.float32)
    out = jax.block_until_ready(out)
    assert out.shape == (B, mlp2[-1], N1), out.shape
    err = float(jnp.max(jnp.abs(out - ref)))
    assert err < 2e-3, err

    # Default bf16 MXU-operand path (f32 accumulation) — looser check.
    out_bf16 = jax.block_until_ready(
        pointnet_set_upconv(xyz1, xyz2, feat1, feat2, mlp1_params, mlp2_params, nsample))
    assert out_bf16.shape == (B, mlp2[-1], N1)
    assert float(jnp.max(jnp.abs(out_bf16 - ref))) < 0.5

    print("KERNEL_OK")
</pallas_src>

<mosaic_0001>
module attributes {stable_mosaic.version = 11 : i64} {
  func.func @kernel(%arg0: i32, %arg1: i32, %arg2: memref<1x16x3xf32, #tpu.memory_space<vmem>>, %arg3: memref<1x3x128xf32, #tpu.memory_space<vmem>>, %arg4: memref<1x4x16xf32, #tpu.memory_space<vmem>>, %arg5: memref<1x128x16xf32, #tpu.memory_space<vmem>>, %arg6: memref<3x16xf32, #tpu.memory_space<vmem>>, %arg7: memref<1x16xf32, #tpu.memory_space<vmem>>, %arg8: memref<16x32xf32, #tpu.memory_space<vmem>>, %arg9: memref<1x32xf32, #tpu.memory_space<vmem>>, %arg10: memref<32x32xf32, #tpu.memory_space<vmem>>, %arg11: memref<32x4xf32, #tpu.memory_space<vmem>>, %arg12: memref<32x1xf32, #tpu.memory_space<vmem>>, %arg13: memref<1x32x16xf32, #tpu.memory_space<vmem>>) attributes {dimension_semantics = [#tpu.dimension_semantics<parallel>, #tpu.dimension_semantics<parallel>], iteration_bounds = array<i64: 2, 1>, scalar_prefetch = 0 : i64, scratch_operands = 0 : i64, tpu.core_type = #tpu.core_type<tc>, window_params = [{transform_indices = @transform_0, window_bounds = array<i64: 1, 16, 3>}, {transform_indices = @transform_1, window_bounds = array<i64: 1, 3, 128>}, {transform_indices = @transform_2, window_bounds = array<i64: 1, 4, 16>}, {transform_indices = @transform_3, window_bounds = array<i64: 1, 128, 16>}, {pipeline_mode = #tpu.pipeline_mode<synchronous>, transform_indices = @transform_4, window_bounds = array<i64: 3, 16>}, {pipeline_mode = #tpu.pipeline_mode<synchronous>, transform_indices = @transform_5, window_bounds = array<i64: 1, 16>}, {pipeline_mode = #tpu.pipeline_mode<synchronous>, transform_indices = @transform_6, window_bounds = array<i64: 16, 32>}, {pipeline_mode = #tpu.pipeline_mode<synchronous>, transform_indices = @transform_7, window_bounds = array<i64: 1, 32>}, {pipeline_mode = #tpu.pipeline_mode<synchronous>, transform_indices = @transform_8, window_bounds = array<i64: 32, 32>}, {pipeline_mode = #tpu.pipeline_mode<synchronous>, transform_indices = @transform_9, window_bounds = array<i64: 32, 4>}, {pipeline_mode = #tpu.pipeline_mode<synchronous>, transform_indices = @transform_10, window_bounds = array<i64: 32, 1>}, {transform_indices = @transform_11, window_bounds = array<i64: 1, 32, 16>}]} {
    %c0 = arith.constant 0 : index
    %c0_0 = arith.constant 0 : index
    %c0_1 = arith.constant 0 : index
    %0 = vector.load %arg2[%c0, %c0_0, %c0_1] : memref<1x16x3xf32, #tpu.memory_space<vmem>>, vector<1x16x3xf32>
    %1 = vector.shape_cast %0 : vector<1x16x3xf32> to vector<16x3xf32>
    %c0_2 = arith.constant 0 : index
    %c0_3 = arith.constant 0 : index
    %c0_4 = arith.constant 0 : index
    %2 = vector.load %arg3[%c0_2, %c0_3, %c0_4] : memref<1x3x128xf32, #tpu.memory_space<vmem>>, vector<1x3x128xf32>
    %3 = vector.shape_cast %2 : vector<1x3x128xf32> to vector<3x128xf32>
    %c0_5 = arith.constant 0 : index
    %c0_6 = arith.constant 0 : index
    %c0_7 = arith.constant 0 : index
    %4 = vector.load %arg5[%c0_5, %c0_6, %c0_7] : memref<1x128x16xf32, #tpu.memory_space<vmem>>, vector<1x128x16xf32>
    %5 = vector.shape_cast %4 : vector<1x128x16xf32> to vector<128x16xf32>
    %6 = vector.extract_strided_slice %1 {offsets = [0, 0], sizes = [16, 1], strides = [1, 1]} : vector<16x3xf32> to vector<16x1xf32>
    %7 = vector.extract_strided_slice %3 {offsets = [0, 0], sizes = [1, 128], strides = [1, 1]} : vector<3x128xf32> to vector<1x128xf32>
    %8 = vector.broadcast %6 : vector<16x1xf32> to vector<16x128xf32>
    %9 = vector.broadcast %7 : vector<1x128xf32> to vector<16x128xf32>
    %10 = arith.subf %8, %9 : vector<16x128xf32>
    %11 = vector.extract_strided_slice %1 {offsets = [0, 1], sizes = [16, 1], strides = [1, 1]} : vector<16x3xf32> to vector<16x1xf32>
    %12 = vector.extract_strided_slice %3 {offsets = [1, 0], sizes = [1, 128], strides = [1, 1]} : vector<3x128xf32> to vector<1x128xf32>
    %13 = vector.broadcast %11 : vector<16x1xf32> to vector<16x128xf32>
    %14 = vector.broadcast %12 : vector<1x128xf32> to vector<16x128xf32>
    %15 = arith.subf %13, %14 : vector<16x128xf32>
    %16 = vector.extract_strided_slice %1 {offsets = [0, 2], sizes = [16, 1], strides = [1, 1]} : vector<16x3xf32> to vector<16x1xf32>
    %17 = vector.extract_strided_slice %3 {offsets = [2, 0], sizes = [1, 128], strides = [1, 1]} : vector<3x128xf32> to vector<1x128xf32>
    %18 = vector.broadcast %16 : vector<16x1xf32> to vector<16x128xf32>
    %19 = vector.broadcast %17 : vector<1x128xf32> to vector<16x128xf32>
    %20 = arith.subf %18, %19 : vector<16x128xf32>
    %21 = arith.mulf %10, %10 : vector<16x128xf32>
    %22 = arith.mulf %15, %15 : vector<16x128xf32>
    %23 = arith.addf %21, %22 : vector<16x128xf32>
    %24 = arith.mulf %20, %20 : vector<16x128xf32>
    %25 = arith.addf %23, %24 : vector<16x128xf32>
    %26 = tpu.iota {dimensions = array<i32: 1>} : vector<16x128xi32>
    %27 = tpu.bitcast %25 : vector<16x128xf32> -> vector<16x128xi32>
    %c-128_i32 = arith.constant -128 : i32
    %28 = vector.broadcast %c-128_i32 : i32 to vector<16x128xi32>
    %29 = arith.andi %27, %28 : vector<16x128xi32>
    %30 = arith.ori %29, %26 : vector<16x128xi32>
    %c0_8 = arith.constant 0 : index
    %c0_9 = arith.constant 0 : index
    %31 = vector.load %arg6[%c0_8, %c0_9] : memref<3x16xf32, #tpu.memory_space<vmem>>, vector<3x16xf32>
    %c0_10 = arith.constant 0 : index
    %c0_11 = arith.constant 0 : index
    %32 = vector.load %arg7[%c0_10, %c0_11] : memref<1x16xf32, #tpu.memory_space<vmem>>, vector<1x16xf32>
    %33 = vector.extract_strided_slice %1 {offsets = [0, 0], sizes = [16, 1], strides = [1, 1]} : vector<16x3xf32> to vector<16x1xf32>
    %34 = vector.extract_strided_slice %31 {offsets = [0, 0], sizes = [1, 16], strides = [1, 1]} : vector<3x16xf32> to vector<1x16xf32>
    %35 = vector.broadcast %33 : vector<16x1xf32> to vector<16x16xf32>
    %36 = vector.broadcast %34 : vector<1x16xf32> to vector<16x16xf32>
    %37 = arith.mulf %35, %36 : vector<16x16xf32>
    %38 = vector.extract_strided_slice %1 {offsets = [0, 1], sizes = [16, 1], strides = [1, 1]} : vector<16x3xf32> to vector<16x1xf32>
    %39 = vector.extract_strided_slice %31 {offsets = [1, 0], sizes = [1, 16], strides = [1, 1]} : vector<3x16xf32> to vector<1x16xf32>
    %40 = vector.broadcast %38 : vector<16x1xf32> to vector<16x16xf32>
    %41 = vector.broadcast %39 : vector<1x16xf32> to vector<16x16xf32>
    %42 = arith.mulf %40, %41 : vector<16x16xf32>
    %43 = arith.addf %37, %42 : vector<16x16xf32>
    %44 = vector.extract_strided_slice %1 {offsets = [0, 2], sizes = [16, 1], strides = [1, 1]} : vector<16x3xf32> to vector<16x1xf32>
    %45 = vector.extract_strided_slice %31 {offsets = [2, 0], sizes = [1, 16], strides = [1, 1]} : vector<3x16xf32> to vector<1x16xf32>
    %46 = vector.broadcast %44 : vector<16x1xf32> to vector<16x16xf32>
    %47 = vector.broadcast %45 : vector<1x16xf32> to vector<16x16xf32>
    %48 = arith.mulf %46, %47 : vector<16x16xf32>
    %49 = arith.addf %43, %48 : vector<16x16xf32>
    %50 = vector.broadcast %32 : vector<1x16xf32> to vector<16x16xf32>
    %51 = arith.subf %50, %49 : vector<16x16xf32>
    %c0_12 = arith.constant 0 : index
    %c0_13 = arith.constant 0 : index
    %52 = vector.load %arg8[%c0_12, %c0_13] : memref<16x32xf32, #tpu.memory_space<vmem>>, vector<16x32xf32>
    %c0_14 = arith.constant 0 : index
    %c0_15 = arith.constant 0 : index
    %53 = vector.load %arg9[%c0_14, %c0_15] : memref<1x32xf32, #tpu.memory_space<vmem>>, vector<1x32xf32>
    %cst = arith.constant dense<2147483647> : vector<16xi32>
    %54 = vector.multi_reduction <minsi>, %30, %cst [1] : vector<16x128xi32> to vector<16xi32>
    %55 = vector.shape_cast %54 : vector<16xi32> to vector<16x1xi32>
    %c127_i32 = arith.constant 127 : i32
    %56 = vector.broadcast %c127_i32 : i32 to vector<16x1xi32>
    %57 = arith.andi %55, %56 : vector<16x1xi32>
    %58 = vector.broadcast %57 : vector<16x1xi32> to vector<16x128xi32>
    %59 = arith.cmpi eq, %26, %58 : vector<16x128xi32>
    %c2147483647_i32 = arith.constant 2147483647 : i32
    %60 = vector.broadcast %c2147483647_i32 : i32 to vector<16x128xi32>
    %61 = arith.select %59, %60, %30 : vector<16x128xi1>, vector<16x128xi32>
    %cst_16 = arith.constant 1.000000e+00 : f32
    %cst_17 = arith.constant 0.000000e+00 : f32
    %62 = vector.broadcast %cst_16 : f32 to vector<16x128xf32>
    %63 = vector.broadcast %cst_17 : f32 to vector<16x128xf32>
    %64 = arith.select %59, %62, %63 : vector<16x128xi1>, vector<16x128xf32>
    %cst_18 = arith.constant dense<0.000000e+00> : vector<16x16xf32>
    %65 = tpu.matmul %64, %5, %cst_18 {dimension_numbers = #tpu.dot_dimension_numbers<[1], [0], [0], [1], [0, 0, 1, 1], [], []>} : vector<16x128xf32>, vector<128x16xf32>, vector<16x16xf32> -> vector<16x16xf32>
    %66 = arith.addf %65, %51 : vector<16x16xf32>
    %cst_19 = arith.constant 0.000000e+00 : f32
    %67 = vector.broadcast %cst_19 : f32 to vector<16x16xf32>
    %68 = arith.maximumf %66, %67 : vector<16x16xf32>
    %cst_20 = arith.constant dense<0.000000e+00> : vector<16x32xf32>
    %69 = tpu.matmul %68, %52, %cst_20 {dimension_numbers = #tpu.dot_dimension_numbers<[1], [0], [0], [1], [0, 0, 1, 1], [], []>} : vector<16x16xf32>, vector<16x32xf32>, vector<16x32xf32> -> vector<16x32xf32>
    %70 = vector.broadcast %53 : vector<1x32xf32> to vector<16x32xf32>
    %71 = arith.addf %69, %70 : vector<16x32xf32>
    %cst_21 = arith.constant 0.000000e+00 : f32
    %72 = vector.broadcast %cst_21 : f32 to vector<16x32xf32>
    %73 = arith.maximumf %71, %72 : vector<16x32xf32>
    %cst_22 = arith.constant dense<2147483647> : vector<16xi32>
    %74 = vector.multi_reduction <minsi>, %61, %cst_22 [1] : vector<16x128xi32> to vector<16xi32>
    %75 = vector.shape_cast %74 : vector<16xi32> to vector<16x1xi32>
    %c127_i32_23 = arith.constant 127 : i32
    %76 = vector.broadcast %c127_i32_23 : i32 to vector<16x1xi32>
    %77 = arith.andi %75, %76 : vector<16x1xi32>
    %78 = vector.broadcast %77 : vector<16x1xi32> to vector<16x128xi32>
    %79 = arith.cmpi eq, %26, %78 : vector<16x128xi32>
    %c2147483647_i32_24 = arith.constant 2147483647 : i32
    %80 = vector.broadcast %c2147483647_i32_24 : i32 to vector<16x128xi32>
    %81 = arith.select %79, %80, %61 : vector<16x128xi1>, vector<16x128xi32>
    %cst_25 = arith.constant 1.000000e+00 : f32
    %cst_26 = arith.constant 0.000000e+00 : f32
    %82 = vector.broadcast %cst_25 : f32 to vector<16x128xf32>
    %83 = vector.broadcast %cst_26 : f32 to vector<16x128xf32>
    %84 = arith.select %79, %82, %83 : vector<16x128xi1>, vector<16x128xf32>
    %cst_27 = arith.constant dense<0.000000e+00> : vector<16x16xf32>
    %85 = tpu.matmul %84, %5, %cst_27 {dimension_numbers = #tpu.dot_dimension_numbers<[1], [0], [0], [1], [0, 0, 1, 1], [], []>} : vector<16x128xf32>, vector<128x16xf32>, vector<16x16xf32> -> vector<16x16xf32>
    %86 = arith.addf %85, %51 : vector<16x16xf32>
    %cst_28 = arith.constant 0.000000e+00 : f32
    %87 = vector.broadcast %cst_28 : f32 to vector<16x16xf32>
    %88 = arith.maximumf %86, %87 : vector<16x16xf32>
    %cst_29 = arith.constant dense<0.000000e+00> : vector<16x32xf32>
    %89 = tpu.matmul %88, %52, %cst_29 {dimension_numbers = #tpu.dot_dimension_numbers<[1], [0], [0], [1], [0, 0, 1, 1], [], []>} : vector<16x16xf32>, vector<16x32xf32>, vector<16x32xf32> -> vector<16x32xf32>
    %90 = vector.broadcast %53 : vector<1x32xf32> to vector<16x32xf32>
    %91 = arith.addf %89, %90 : vector<16x32xf32>
    %cst_30 = arith.constant 0.000000e+00 : f32
    %92 = vector.broadcast %cst_30 : f32 to vector<16x32xf32>
    %93 = arith.maximumf %91, %92 : vector<16x32xf32>
    %94 = arith.maximumf %73, %93 : vector<16x32xf32>
    %cst_31 = arith.constant dense<2147483647> : vector<16xi32>
    %95 = vector.multi_reduction <minsi>, %81, %cst_31 [1] : vector<16x128xi32> to vector<16xi32>
    %96 = vector.shape_cast %95 : vector<16xi32> to vector<16x1xi32>
    %c127_i32_32 = arith.constant 127 : i32
    %97 = vector.broadcast %c127_i32_32 : i32 to vector<16x1xi32>
    %98 = arith.andi %96, %97 : vector<16x1xi32>
    %99 = vector.broadcast %98 : vector<16x1xi32> to vector<16x128xi32>
    %100 = arith.cmpi eq, %26, %99 : vector<16x128xi32>
    %c2147483647_i32_33 = arith.constant 2147483647 : i32
    %101 = vector.broadcast %c2147483647_i32_33 : i32 to vector<16x128xi32>
    %102 = arith.select %100, %101, %81 : vector<16x128xi1>, vector<16x128xi32>
    %cst_34 = arith.constant 1.000000e+00 : f32
    %cst_35 = arith.constant 0.000000e+00 : f32
    %103 = vector.broadcast %cst_34 : f32 to vector<16x128xf32>
    %104 = vector.broadcast %cst_35 : f32 to vector<16x128xf32>
    %105 = arith.select %100, %103, %104 : vector<16x128xi1>, vector<16x128xf32>
    %cst_36 = arith.constant dense<0.000000e+00> : vector<16x16xf32>
    %106 = tpu.matmul %105, %5, %cst_36 {dimension_numbers = #tpu.dot_dimension_numbers<[1], [0], [0], [1], [0, 0, 1, 1], [], []>} : vector<16x128xf32>, vector<128x16xf32>, vector<16x16xf32> -> vector<16x16xf32>
    %107 = arith.addf %106, %51 : vector<16x16xf32>
    %cst_37 = arith.constant 0.000000e+00 : f32
    %108 = vector.broadcast %cst_37 : f32 to vector<16x16xf32>
    %109 = arith.maximumf %107, %108 : vector<16x16xf32>
    %cst_38 = arith.constant dense<0.000000e+00> : vector<16x32xf32>
    %110 = tpu.matmul %109, %52, %cst_38 {dimension_numbers = #tpu.dot_dimension_numbers<[1], [0], [0], [1], [0, 0, 1, 1], [], []>} : vector<16x16xf32>, vector<16x32xf32>, vector<16x32xf32> -> vector<16x32xf32>
    %111 = vector.broadcast %53 : vector<1x32xf32> to vector<16x32xf32>
    %112 = arith.addf %110, %111 : vector<16x32xf32>
    %cst_39 = arith.constant 0.000000e+00 : f32
    %113 = vector.broadcast %cst_39 : f32 to vector<16x32xf32>
    %114 = arith.maximumf %112, %113 : vector<16x32xf32>
    %115 = arith.maximumf %94, %114 : vector<16x32xf32>
    %cst_40 = arith.constant dense<2147483647> : vector<16xi32>
    %116 = vector.multi_reduction <minsi>, %102, %cst_40 [1] : vector<16x128xi32> to vector<16xi32>
    %117 = vector.shape_cast %116 : vector<16xi32> to vector<16x1xi32>
    %c127_i32_41 = arith.constant 127 : i32
    %118 = vector.broadcast %c127_i32_41 : i32 to vector<16x1xi32>
    %119 = arith.andi %117, %118 : vector<16x1xi32>
    %120 = vector.broadcast %119 : vector<16x1xi32> to vector<16x128xi32>
    %121 = arith.cmpi eq, %26, %120 : vector<16x128xi32>
    %cst_42 = arith.constant 1.000000e+00 : f32
    %cst_43 = arith.constant 0.000000e+00 : f32
    %122 = vector.broadcast %cst_42 : f32 to vector<16x128xf32>
    %123 = vector.broadcast %cst_43 : f32 to vector<16x128xf32>
    %124 = arith.select %121, %122, %123 : vector<16x128xi1>, vector<16x128xf32>
    %cst_44 = arith.constant dense<0.000000e+00> : vector<16x16xf32>
    %125 = tpu.matmul %124, %5, %cst_44 {dimension_numbers = #tpu.dot_dimension_numbers<[1], [0], [0], [1], [0, 0, 1, 1], [], []>} : vector<16x128xf32>, vector<128x16xf32>, vector<16x16xf32> -> vector<16x16xf32>
    %126 = arith.addf %125, %51 : vector<16x16xf32>
    %cst_45 = arith.constant 0.000000e+00 : f32
    %127 = vector.broadcast %cst_45 : f32 to vector<16x16xf32>
    %128 = arith.maximumf %126, %127 : vector<16x16xf32>
    %cst_46 = arith.constant dense<0.000000e+00> : vector<16x32xf32>
    %129 = tpu.matmul %128, %52, %cst_46 {dimension_numbers = #tpu.dot_dimension_numbers<[1], [0], [0], [1], [0, 0, 1, 1], [], []>} : vector<16x16xf32>, vector<16x32xf32>, vector<16x32xf32> -> vector<16x32xf32>
    %130 = vector.broadcast %53 : vector<1x32xf32> to vector<16x32xf32>
    %131 = arith.addf %129, %130 : vector<16x32xf32>
    %cst_47 = arith.constant 0.000000e+00 : f32
    %132 = vector.broadcast %cst_47 : f32 to vector<16x32xf32>
    %133 = arith.maximumf %131, %132 : vector<16x32xf32>
    %134 = arith.maximumf %115, %133 : vector<16x32xf32>
    %c0_48 = arith.constant 0 : index
    %c0_49 = arith.constant 0 : index
    %c0_50 = arith.constant 0 : index
    %135 = vector.load %arg4[%c0_48, %c0_49, %c0_50] : memref<1x4x16xf32, #tpu.memory_space<vmem>>, vector<1x4x16xf32>
    %136 = vector.shape_cast %135 : vector<1x4x16xf32> to vector<4x16xf32>
    %c0_51 = arith.constant 0 : index
    %c0_52 = arith.constant 0 : index
    %137 = vector.load %arg10[%c0_51, %c0_52] : memref<32x32xf32, #tpu.memory_space<vmem>>, vector<32x32xf32>
    %c0_53 = arith.constant 0 : index
    %c0_54 = arith.constant 0 : index
    %138 = vector.load %arg11[%c0_53, %c0_54] : memref<32x4xf32, #tpu.memory_space<vmem>>, vector<32x4xf32>
    %c0_55 = arith.constant 0 : index
    %c0_56 = arith.constant 0 : index
    %139 = vector.load %arg12[%c0_55, %c0_56] : memref<32x1xf32, #tpu.memory_space<vmem>>, vector<32x1xf32>
    %cst_57 = arith.constant dense<0.000000e+00> : vector<32x16xf32>
    %140 = tpu.matmul %137, %134, %cst_57 {dimension_numbers = #tpu.dot_dimension_numbers<[1], [1], [0], [0], [0, 0, 1, 0], [], []>} : vector<32x32xf32>, vector<16x32xf32>, vector<32x16xf32> -> vector<32x16xf32>
    %cst_58 = arith.constant dense<0.000000e+00> : vector<32x16xf32>
    %141 = tpu.matmul %138, %136, %cst_58 {dimension_numbers = #tpu.dot_dimension_numbers<[1], [0], [0], [1], [0, 0, 1, 1], [], []>} : vector<32x4xf32>, vector<4x16xf32>, vector<32x16xf32> -> vector<32x16xf32>
    %142 = arith.addf %140, %141 : vector<32x16xf32>
    %143 = vector.broadcast %139 : vector<32x1xf32> to vector<32x16xf32>
    %144 = arith.addf %142, %143 : vector<32x16xf32>
    %cst_59 = arith.constant 0.000000e+00 : f32
    %145 = vector.broadcast %cst_59 : f32 to vector<32x16xf32>
    %146 = arith.maximumf %144, %145 : vector<32x16xf32>
    %c0_60 = arith.constant 0 : index
    %c0_61 = arith.constant 0 : index
    %c0_62 = arith.constant 0 : index
    %147 = vector.load %arg13[%c0_60, %c0_61, %c0_62] : memref<1x32x16xf32, #tpu.memory_space<vmem>>, vector<1x32x16xf32>
    %148 = vector.shape_cast %147 : vector<1x32x16xf32> to vector<32x16xf32>
    %149 = vector.shape_cast %146 : vector<32x16xf32> to vector<1x32x16xf32>
    tpu.vector_store %arg13[%c0_60, %c0_61, %c0_62], %149 {strides = array<i32>} : memref<1x32x16xf32, #tpu.memory_space<vmem>>, vector<1x32x16xf32>,
    return
  }
  func.func @transform_0(%arg0: i32, %arg1: i32) -> (i32, i32, i32) {
    %c0_i32 = arith.constant 0 : i32
    %c0_i32_0 = arith.constant 0 : i32
    return %arg0, %arg1, %c0_i32 : i32, i32, i32
  }
  func.func @transform_1(%arg0: i32, %arg1: i32) -> (i32, i32, i32) {
    %c0_i32 = arith.constant 0 : i32
    %c0_i32_0 = arith.constant 0 : i32
    %c0_i32_1 = arith.constant 0 : i32
    return %arg0, %c0_i32, %c0_i32_0 : i32, i32, i32
  }
  func.func @transform_2(%arg0: i32, %arg1: i32) -> (i32, i32, i32) {
    %c0_i32 = arith.constant 0 : i32
    %c0_i32_0 = arith.constant 0 : i32
    return %arg0, %c0_i32, %arg1 : i32, i32, i32
  }
  func.func @transform_3(%arg0: i32, %arg1: i32) -> (i32, i32, i32) {
    %c0_i32 = arith.constant 0 : i32
    %c0_i32_0 = arith.constant 0 : i32
    %c0_i32_1 = arith.constant 0 : i32
    return %arg0, %c0_i32, %c0_i32_0 : i32, i32, i32
  }
  func.func @transform_4(%arg0: i32, %arg1: i32) -> (i32, i32) {
    %c0_i32 = arith.constant 0 : i32
    %c0_i32_0 = arith.constant 0 : i32
    %c0_i32_1 = arith.constant 0 : i32
    return %c0_i32, %c0_i32_0 : i32, i32
  }
  func.func @transform_5(%arg0: i32, %arg1: i32) -> (i32, i32) {
    %c0_i32 = arith.constant 0 : i32
    %c0_i32_0 = arith.constant 0 : i32
    %c0_i32_1 = arith.constant 0 : i32
    return %c0_i32, %c0_i32_0 : i32, i32
  }
  func.func @transform_6(%arg0: i32, %arg1: i32) -> (i32, i32) {
    %c0_i32 = arith.constant 0 : i32
    %c0_i32_0 = arith.constant 0 : i32
    %c0_i32_1 = arith.constant 0 : i32
    return %c0_i32, %c0_i32_0 : i32, i32
  }
  func.func @transform_7(%arg0: i32, %arg1: i32) -> (i32, i32) {
    %c0_i32 = arith.constant 0 : i32
    %c0_i32_0 = arith.constant 0 : i32
    %c0_i32_1 = arith.constant 0 : i32
    return %c0_i32, %c0_i32_0 : i32, i32
  }
  func.func @transform_8(%arg0: i32, %arg1: i32) -> (i32, i32) {
    %c0_i32 = arith.constant 0 : i32
    %c0_i32_0 = arith.constant 0 : i32
    %c0_i32_1 = arith.constant 0 : i32
    return %c0_i32, %c0_i32_0 : i32, i32
  }
  func.func @transform_9(%arg0: i32, %arg1: i32) -> (i32, i32) {
    %c0_i32 = arith.constant 0 : i32
    %c0_i32_0 = arith.constant 0 : i32
    %c0_i32_1 = arith.constant 0 : i32
    return %c0_i32, %c0_i32_0 : i32, i32
  }
  func.func @transform_10(%arg0: i32, %arg1: i32) -> (i32, i32) {
    %c0_i32 = arith.constant 0 : i32
    %c0_i32_0 = arith.constant 0 : i32
    %c0_i32_1 = arith.constant 0 : i32
    return %c0_i32, %c0_i32_0 : i32, i32
  }
  func.func @transform_11(%arg0: i32, %arg1: i32) -> (i32, i32, i32) {
    %c0_i32 = arith.constant 0 : i32
    %c0_i32_0 = arith.constant 0 : i32
    return %arg0, %c0_i32, %arg1 : i32, i32, i32
  }
}

</mosaic_0001>

<llo_original>
// kernel: tpu_custom_call.1
$region0: #{tpu_custom_call.1}
  #allocation0 [shape = 'u32[]', space=smem, size = 0x4, offset = 0x4, fixed_abs, tag = 'smem constant byte address 0x4 - core index']
  #allocation1 [shape = 'u32[144,128]{1,0:T(1,128)}', space=vmem, size = 0x12000, scoped, tag = 'internal scratch']
  %s0 = inlined_call_operand.vmem [shape: f32[2,16,3], index: 0, kind: input, shape index: {}]
  %s1 = inlined_call_operand.vmem [shape: f32[2,3,128], index: 1, kind: input, shape index: {}]
  %s2 = inlined_call_operand.vmem [shape: f32[2,4,16], index: 2, kind: input, shape index: {}]
  %s3 = inlined_call_operand.vmem [shape: f32[2,128,16], index: 3, kind: input, shape index: {}]
  %s4 = inlined_call_operand.vmem [shape: f32[3,16], index: 4, kind: input, shape index: {}]
  %s5 = inlined_call_operand.vmem [shape: f32[1,16], index: 5, kind: input, shape index: {}]
  %s6 = inlined_call_operand.vmem [shape: f32[16,32], index: 6, kind: input, shape index: {}]
  %s7 = inlined_call_operand.vmem [shape: f32[1,32], index: 7, kind: input, shape index: {}]
  %s8 = inlined_call_operand.vmem [shape: f32[32,32], index: 8, kind: input, shape index: {}]
  %s9 = inlined_call_operand.vmem [shape: f32[32,4], index: 9, kind: input, shape index: {}]
  %s10 = inlined_call_operand.vmem [shape: f32[32,1], index: 10, kind: input, shape index: {}]
  %s11 = inlined_call_operand.vmem [shape: f32[2,32,16], index: 11, kind: output, shape index: {}]
  %s12 = sld [smem:[#allocation0]]
  $region77: #{tpu_custom_call.1} parent=0
    _
  %s14 = ssub.s32 1, %s12
  %s15 = scalar_select 0, %s14, %s12
  loop: start=0, step=1, limit=4
  $region2: #{tpu_custom_call.1} parent=0 // loop_pre_header
    _
  $region3: #{tpu_custom_call.1} parent=0 // loop_header
    %s17 = sphi 0, %s21
    %p18 = scmp.ge.s32.totalorder %s17, 4
    %s24 = sphi 0, %s36
    %s25 = sphi 0, %s32
    %s26 = sphi 0, %s24
    %s27 = sphi 0, %s25
    %s28 = sphi 0, %s26
    %s29 = sphi 0, %s27
    %s41 = sphi 0, %s43
    %s44 = sphi 0, %s41
    %s45 = sphi 0, %s44
    %s61 = sphi 0, %s45
    %s67 = sphi 0, %s69
    %s70 = sphi 0, %s67
    %s71 = sphi 0, %s70
    %s87 = sphi 0, %s71
    %s95 = sphi 0, %s97
    %s98 = sphi 0, %s95
    %s99 = sphi 0, %s98
    %s115 = sphi 0, %s99
    %s121 = sphi 0, %s123
    %s124 = sphi 0, %s121
    %s125 = sphi 0, %s124
    %s141 = sphi 0, %s125
    %s145 = sphi 0, %s145
    %s147 = sphi 0, %s145
    %s148 = sphi 0, %s147
    %s162 = sphi 0, %s148
    %s166 = sphi 0, %s166
    %s168 = sphi 0, %s166
    %s169 = sphi 0, %s168
    %s183 = sphi 0, %s169
    %s187 = sphi 0, %s187
    %s189 = sphi 0, %s187
    %s190 = sphi 0, %s189
    %s204 = sphi 0, %s190
    %s208 = sphi 0, %s208
    %s210 = sphi 0, %s208
    %s211 = sphi 0, %s210
    %s225 = sphi 0, %s211
    %s229 = sphi 0, %s229
    %s231 = sphi 0, %s229
    %s232 = sphi 0, %s231
    %s246 = sphi 0, %s232
    %s250 = sphi 0, %s250
    %s252 = sphi 0, %s250
    %s253 = sphi 0, %s252
    %s267 = sphi 0, %s253
    %s271 = sphi 0, %s271
    %s273 = sphi 0, %s271
    %s274 = sphi 0, %s273
    %s288 = sphi 0, %s274
    %s296 = sphi 0, %s298
    %s299 = sphi 0, %s296
    %s300 = sphi 0, %s299
    %s316 = sphi 0, %s300
  $region4: #{tpu_custom_call.1} parent=0 // loop_header_branch
    %20 = sbr.rel (%p18) target = $region8
  $region5: #{tpu_custom_call.1} parent=0 // loop_body
    %s22 = ssub.s32 %s17, 1
    %s23 = ssub.s32 %s17, 2
    %s30 = sadd.s32 1, %s25
    %p31 = scmp.ge.s32.totalorder %s30, 1
    %s32 = scalar_select %p31, 0, %s30
    %s33 = sadd.s32 1, %s24
    %s34 = scalar_select %p31, %s33, %s24
    %p35 = scmp.ge.s32.totalorder %s34, 2
    %s36 = scalar_select %p35, 0, %s34
    %s37 = ssub.s32 %s24, %s36
    %s38 = ssub.s32 %s25, %s32
    %s39 = sor.u32 %s37, %s38
    %p40 = scmp.eq.s32.totalorder %s39, 0
    %s42 = sadd.s32 %s41, 1
    %s43 = scalar_select %p40, %s41, %s42
    %p46 = pneg %p40
    %p47 = scmp.eq.s32.totalorder %s17, 1
    %p48 = por %p46, %p47
    %p49 = scmp.ne.s32.totalorder %s41, %s44
    %p50 = scmp.eq.s32.totalorder %s17, 0
    %p51 = por %p49, %p50
    %p52 = scmp.ne.s32.totalorder %s41, %s44
    %p53 = scmp.eq.s32.totalorder %s22, 1
    %p54 = por %p52, %p53
    %p55 = scmp.ne.s32.totalorder %s44, %s45
    %p56 = scmp.eq.s32.totalorder %s22, 0
    %p57 = por %p55, %p56
    %p58 = scmp.ne.s32.totalorder %s44, %s45
    %p59 = scmp.eq.s32.totalorder %s23, 1
    %p60 = por %p58, %p59
    %p62 = scmp.ne.s32.totalorder %s45, %s61
    %p63 = scmp.eq.s32.totalorder %s23, 0
    %p64 = por %p62, %p63
    %s65 = ssub.s32 %s24, %s36
    %p66 = scmp.eq.s32.totalorder %s65, 0
    %s68 = sadd.s32 %s67, 1
    %s69 = scalar_select %p66, %s67, %s68
    %p72 = pneg %p66
    %p73 = scmp.eq.s32.totalorder %s17, 1
    %p74 = por %p72, %p73
    %p75 = scmp.ne.s32.totalorder %s67, %s70
    %p76 = scmp.eq.s32.totalorder %s17, 0
    %p77 = por %p75, %p76
    %p78 = scmp.ne.s32.totalorder %s67, %s70
    %p79 = scmp.eq.s32.totalorder %s22, 1
    %p80 = por %p78, %p79
    %p81 = scmp.ne.s32.totalorder %s70, %s71
    %p82 = scmp.eq.s32.totalorder %s22, 0
    %p83 = por %p81, %p82
    %p84 = scmp.ne.s32.totalorder %s70, %s71
    %p85 = scmp.eq.s32.totalorder %s23, 1
    %p86 = por %p84, %p85
    %p88 = scmp.ne.s32.totalorder %s71, %s87
    %p89 = scmp.eq.s32.totalorder %s23, 0
    %p90 = por %p88, %p89
    %s91 = ssub.s32 %s24, %s36
    %s92 = ssub.s32 %s25, %s32
    %s93 = sor.u32 %s91, %s92
    %p94 = scmp.eq.s32.totalorder %s93, 0
    %s96 = sadd.s32 %s95, 1
    %s97 = scalar_select %p94, %s95, %s96
    %p100 = pneg %p94
    %p101 = scmp.eq.s32.totalorder %s17, 1
    %p102 = por %p100, %p101
    %p103 = scmp.ne.s32.totalorder %s95, %s98
    %p104 = scmp.eq.s32.totalorder %s17, 0
    %p105 = por %p103, %p104
    %p106 = scmp.ne.s32.totalorder %s95, %s98
    %p107 = scmp.eq.s32.totalorder %s22, 1
    %p108 = por %p106, %p107
    %p109 = scmp.ne.s32.totalorder %s98, %s99
    %p110 = scmp.eq.s32.totalorder %s22, 0
    %p111 = por %p109, %p110
    %p112 = scmp.ne.s32.totalorder %s98, %s99
    %p113 = scmp.eq.s32.totalorder %s23, 1
    %p114 = por %p112, %p113
    %p116 = scmp.ne.s32.totalorder %s99, %s115
    %p117 = scmp.eq.s32.totalorder %s23, 0
    %p118 = por %p116, %p117
    %s119 = ssub.s32 %s24, %s36
    %p120 = scmp.eq.s32.totalorder %s119, 0
    %s122 = sadd.s32 %s121, 1
    %s123 = scalar_select %p120, %s121, %s122
    %p126 = pneg %p120
    %p127 = scmp.eq.s32.totalorder %s17, 1
    %p128 = por %p126, %p127
    %p129 = scmp.ne.s32.totalorder %s121, %s124
    %p130 = scmp.eq.s32.totalorder %s17, 0
    %p131 = por %p129, %p130
    %p132 = scmp.ne.s32.totalorder %s121, %s124
    %p133 = scmp.eq.s32.totalorder %s22, 1
    %p134 = por %p132, %p133
    %p135 = scmp.ne.s32.totalorder %s124, %s125
    %p136 = scmp.eq.s32.totalorder %s22, 0
    %p137 = por %p135, %p136
    %p138 = scmp.ne.s32.totalorder %s124, %s125
    %p139 = scmp.eq.s32.totalorder %s23, 1
    %p140 = por %p138, %p139
    %p142 = scmp.ne.s32.totalorder %s125, %s141
    %p143 = scmp.eq.s32.totalorder %s23, 0
    %p144 = por %p142, %p143
    %s146 = sadd.s32 %s145, 1
    %p149 = scmp.eq.s32.totalorder %s17, 1
    %p150 = scmp.ne.s32.totalorder %s145, %s147
    %p151 = scmp.eq.s32.totalorder %s17, 0
    %p152 = por %p150, %p151
    %p153 = scmp.ne.s32.totalorder %s145, %s147
    %p154 = scmp.eq.s32.totalorder %s22, 1
    %p155 = por %p153, %p154
    %p156 = scmp.ne.s32.totalorder %s147, %s148
    %p157 = scmp.eq.s32.totalorder %s22, 0
    %p158 = por %p156, %p157
    %p159 = scmp.ne.s32.totalorder %s147, %s148
    %p160 = scmp.eq.s32.totalorder %s23, 1
    %p161 = por %p159, %p160
    %p163 = scmp.ne.s32.totalorder %s148, %s162
    %p164 = scmp.eq.s32.totalorder %s23, 0
    %p165 = por %p163, %p164
    %s167 = sadd.s32 %s166, 1
    %p170 = scmp.eq.s32.totalorder %s17, 1
    %p171 = scmp.ne.s32.totalorder %s166, %s168
    %p172 = scmp.eq.s32.totalorder %s17, 0
    %p173 = por %p171, %p172
    %p174 = scmp.ne.s32.totalorder %s166, %s168
    %p175 = scmp.eq.s32.totalorder %s22, 1
    %p176 = por %p174, %p175
    %p177 = scmp.ne.s32.totalorder %s168, %s169
    %p178 = scmp.eq.s32.totalorder %s22, 0
    %p179 = por %p177, %p178
    %p180 = scmp.ne.s32.totalorder %s168, %s169
    %p181 = scmp.eq.s32.totalorder %s23, 1
    %p182 = por %p180, %p181
    %p184 = scmp.ne.s32.totalorder %s169, %s183
    %p185 = scmp.eq.s32.totalorder %s23, 0
    %p186 = por %p184, %p185
    %s188 = sadd.s32 %s187, 1
    %p191 = scmp.eq.s32.totalorder %s17, 1
    %p192 = scmp.ne.s32.totalorder %s187, %s189
    %p193 = scmp.eq.s32.totalorder %s17, 0
    %p194 = por %p192, %p193
    %p195 = scmp.ne.s32.totalorder %s187, %s189
    %p196 = scmp.eq.s32.totalorder %s22, 1
    %p197 = por %p195, %p196
    %p198 = scmp.ne.s32.totalorder %s189, %s190
    %p199 = scmp.eq.s32.totalorder %s22, 0
    %p200 = por %p198, %p199
    %p201 = scmp.ne.s32.totalorder %s189, %s190
    %p202 = scmp.eq.s32.totalorder %s23, 1
    %p203 = por %p201, %p202
    %p205 = scmp.ne.s32.totalorder %s190, %s204
    %p206 = scmp.eq.s32.totalorder %s23, 0
    %p207 = por %p205, %p206
    %s209 = sadd.s32 %s208, 1
    %p212 = scmp.eq.s32.totalorder %s17, 1
    %p213 = scmp.ne.s32.totalorder %s208, %s210
    %p214 = scmp.eq.s32.totalorder %s17, 0
    %p215 = por %p213, %p214
    %p216 = scmp.ne.s32.totalorder %s208, %s210
    %p217 = scmp.eq.s32.totalorder %s22, 1
    %p218 = por %p216, %p217
    %p219 = scmp.ne.s32.totalorder %s210, %s211
    %p220 = scmp.eq.s32.totalorder %s22, 0
    %p221 = por %p219, %p220
    %p222 = scmp.ne.s32.totalorder %s210, %s211
    %p223 = scmp.eq.s32.totalorder %s23, 1
    %p224 = por %p222, %p223
    %p226 = scmp.ne.s32.totalorder %s211, %s225
    %p227 = scmp.eq.s32.totalorder %s23, 0
    %p228 = por %p226, %p227
    %s230 = sadd.s32 %s229, 1
    %p233 = scmp.eq.s32.totalorder %s17, 1
    %p234 = scmp.ne.s32.totalorder %s229, %s231
    %p235 = scmp.eq.s32.totalorder %s17, 0
    %p236 = por %p234, %p235
    %p237 = scmp.ne.s32.totalorder %s229, %s231
    %p238 = scmp.eq.s32.totalorder %s22, 1
    %p239 = por %p237, %p238
    %p240 = scmp.ne.s32.totalorder %s231, %s232
    %p241 = scmp.eq.s32.totalorder %s22, 0
    %p242 = por %p240, %p241
    %p243 = scmp.ne.s32.totalorder %s231, %s232
    %p244 = scmp.eq.s32.totalorder %s23, 1
    %p245 = por %p243, %p244
    %p247 = scmp.ne.s32.totalorder %s232, %s246
    %p248 = scmp.eq.s32.totalorder %s23, 0
    %p249 = por %p247, %p248
    %s251 = sadd.s32 %s250, 1
    %p254 = scmp.eq.s32.totalorder %s17, 1
    %p255 = scmp.ne.s32.totalorder %s250, %s252
    %p256 = scmp.eq.s32.totalorder %s17, 0
    %p257 = por %p255, %p256
    %p258 = scmp.ne.s32.totalorder %s250, %s252
    %p259 = scmp.eq.s32.totalorder %s22, 1
    %p260 = por %p258, %p259
    %p261 = scmp.ne.s32.totalorder %s252, %s253
    %p262 = scmp.eq.s32.totalorder %s22, 0
    %p263 = por %p261, %p262
    %p264 = scmp.ne.s32.totalorder %s252, %s253
    %p265 = scmp.eq.s32.totalorder %s23, 1
    %p266 = por %p264, %p265
    %p268 = scmp.ne.s32.totalorder %s253, %s267
    %p269 = scmp.eq.s32.totalorder %s23, 0
    %p270 = por %p268, %p269
    %s272 = sadd.s32 %s271, 1
    %p275 = scmp.eq.s32.totalorder %s17, 1
    %p276 = scmp.ne.s32.totalorder %s271, %s273
    %p277 = scmp.eq.s32.totalorder %s17, 0
    %p278 = por %p276, %p277
    %p279 = scmp.ne.s32.totalorder %s271, %s273
    %p280 = scmp.eq.s32.totalorder %s22, 1
    %p281 = por %p279, %p280
    %p282 = scmp.ne.s32.totalorder %s273, %s274
    %p283 = scmp.eq.s32.totalorder %s22, 0
    %p284 = por %p282, %p283
    %p285 = scmp.ne.s32.totalorder %s273, %s274
    %p286 = scmp.eq.s32.totalorder %s23, 1
    %p287 = por %p285, %p286
    %p289 = scmp.ne.s32.totalorder %s274, %s288
    %p290 = scmp.eq.s32.totalorder %s23, 0
    %p291 = por %p289, %p290
    %s292 = ssub.s32 %s24, %s36
    %s293 = ssub.s32 %s25, %s32
    %s294 = sor.u32 %s292, %s293
    %p295 = scmp.eq.s32.totalorder %s294, 0
    %s297 = sadd.s32 %s296, 1
    %s298 = scalar_select %p295, %s296, %s297
    %p301 = pneg %p295
    %p302 = scmp.eq.s32.totalorder %s17, 1
    %p303 = por %p301, %p302
    %p304 = scmp.ne.s32.totalorder %s296, %s299
    %p305 = scmp.eq.s32.totalorder %s17, 0
    %p306 = por %p304, %p305
    %p307 = scmp.ne.s32.totalorder %s296, %s299
    %p308 = scmp.eq.s32.totalorder %s22, 1
    %p309 = por %p307, %p308
    %p310 = scmp.ne.s32.totalorder %s299, %s300
    %p311 = scmp.eq.s32.totalorder %s22, 0
    %p312 = por %p310, %p311
    %p313 = scmp.ne.s32.totalorder %s299, %s300
    %p314 = scmp.eq.s32.totalorder %s23, 1
    %p315 = por %p313, %p314
    %p317 = scmp.ne.s32.totalorder %s300, %s316
    %p318 = scmp.eq.s32.totalorder %s23, 0
    %p319 = por %p317, %p318
    %p320 = scmp.le.s32.totalorder 1, %s17
    %p321 = scmp.lt.s32.totalorder %s17, 3
    %p322 = pnand %p320, %p321
    %p323 = pneg %p322
    // Predicated region
    $region9: #{tpu_custom_call.1} parent=5 // pred_check
      _
    $region10: #{tpu_custom_call.1} parent=5 // pred_check_branch
      %325 = sbr.rel (%p322) target = $region12
    $region11: #{tpu_custom_call.1} parent=5 // pred_region
      %s326 = ssub.s32 %s17, 1
      // Predicated region
      $region13: #{tpu_custom_call.1} parent=11 // pred_check
        %p327 = pneg %p158
      $region14: #{tpu_custom_call.1} parent=11 // pred_check_branch
        %329 = sbr.rel (%p327) target = $region16
      $region15: #{tpu_custom_call.1} parent=11 // pred_region
        _
      $region16: #{tpu_custom_call.1} parent=11 // pred_fallthru
        _
      // Predicated region
      $region17: #{tpu_custom_call.1} parent=11 // pred_check
        %p330 = pneg %p179
      $region18: #{tpu_custom_call.1} parent=11 // pred_check_branch
        %332 = sbr.rel (%p330) target = $region20
      $region19: #{tpu_custom_call.1} parent=11 // pred_region
        _
      $region20: #{tpu_custom_call.1} parent=11 // pred_fallthru
        _
      // Predicated region
      $region21: #{tpu_custom_call.1} parent=11 // pred_check
        %p333 = pneg %p200
      $region22: #{tpu_custom_call.1} parent=11 // pred_check_branch
        %335 = sbr.rel (%p333) target = $region24
      $region23: #{tpu_custom_call.1} parent=11 // pred_region
        _
      $region24: #{tpu_custom_call.1} parent=11 // pred_fallthru
        _
      // Predicated region
      $region25: #{tpu_custom_call.1} parent=11 // pred_check
        %p336 = pneg %p221
      $region26: #{tpu_custom_call.1} parent=11 // pred_check_branch
        %338 = sbr.rel (%p336) target = $region28
      $region27: #{tpu_custom_call.1} parent=11 // pred_region
        _
      $region28: #{tpu_custom_call.1} parent=11 // pred_fallthru
        _
      // Predicated region
      $region29: #{tpu_custom_call.1} parent=11 // pred_check
        %p339 = pneg %p242
      $region30: #{tpu_custom_call.1} parent=11 // pred_check_branch
        %341 = sbr.rel (%p339) target = $region32
      $region31: #{tpu_custom_call.1} parent=11 // pred_region
        _
      $region32: #{tpu_custom_call.1} parent=11 // pred_fallthru
        _
      // Predicated region
      $region33: #{tpu_custom_call.1} parent=11 // pred_check
        %p342 = pneg %p263
      $region34: #{tpu_custom_call.1} parent=11 // pred_check_branch
        %344 = sbr.rel (%p342) target = $region36
      $region35: #{tpu_custom_call.1} parent=11 // pred_region
        _
      $region36: #{tpu_custom_call.1} parent=11 // pred_fallthru
        _
      // Predicated region
      $region37: #{tpu_custom_call.1} parent=11 // pred_check
        %p345 = pneg %p284
      $region38: #{tpu_custom_call.1} parent=11 // pred_check_branch
        %347 = sbr.rel (%p345) target = $region40
      $region39: #{tpu_custom_call.1} parent=11 // pred_region
        _
      $region40: #{tpu_custom_call.1} parent=11 // pred_fallthru
        _
    $region12: #{tpu_custom_call.1} parent=5 // pred_fallthru
      _
    %p348 = scmp.lt.s32.totalorder %s17, 2
    // Predicated region
    $region41: #{tpu_custom_call.1} parent=5 // pred_check
      %p349 = pneg %p348
    $region42: #{tpu_custom_call.1} parent=5 // pred_check_branch
      %351 = sbr.rel (%p349) target = $region44
    $region43: #{tpu_custom_call.1} parent=5 // pred_region
      // Predicated region
      $region45: #{tpu_custom_call.1} parent=43 // pred_check
        %p352 = pneg %p51
      $region46: #{tpu_custom_call.1} parent=43 // pred_check_branch
        %354 = sbr.rel (%p352) target = $region48
      $region47: #{tpu_custom_call.1} parent=43 // pred_region
        %s355 = smul.u32 2, %s25
        %p356 = scmp.lt.s32.totalorder %s24, 1
        %s357 = scalar_select %p356, %s24, 1
        %p358 = scmp.lt.s32.totalorder %s355, 1
        %s359 = scalar_select %p358, %s355, 1
        %s360 = smul.addr %s357, 2
        %s361 = sadd.s32 %s359, %s360
        %s362 = smul.addr %s361, 8
        %s363 = scalar_lea.vmem %s0, %s362
        %s364 = smul.u32 2, %s25
      $region48: #{tpu_custom_call.1} parent=43 // pred_fallthru
        _
      // Predicated region
      $region49: #{tpu_custom_call.1} parent=43 // pred_check
        %p365 = pneg %p77
      $region50: #{tpu_custom_call.1} parent=43 // pred_check_branch
        %367 = sbr.rel (%p365) target = $region52
      $region51: #{tpu_custom_call.1} parent=43 // pred_region
        %p368 = scmp.lt.s32.totalorder %s24, 1
        %s369 = scalar_select %p368, %s24, 1
        %s370 = smul.addr %s369, 4
        %s371 = scalar_lea.vmem %s1, %s370
      $region52: #{tpu_custom_call.1} parent=43 // pred_fallthru
        _
      // Predicated region
      $region53: #{tpu_custom_call.1} parent=43 // pred_check
        %p372 = pneg %p105
      $region54: #{tpu_custom_call.1} parent=43 // pred_check_branch
        %374 = sbr.rel (%p372) target = $region56
      $region55: #{tpu_custom_call.1} parent=43 // pred_region
        %p375 = scmp.lt.s32.totalorder %s24, 1
        %s376 = scalar_select %p375, %s24, 1
        %p377 = scmp.lt.s32.totalorder %s25, 0
        %s378 = scalar_select %p377, %s25, 0
        %s379 = sadd.s32 %s378, %s376
        %s380 = smul.addr %s379, 4
        %s381 = scalar_lea.vmem %s2, %s380
      $region56: #{tpu_custom_call.1} parent=43 // pred_fallthru
        _
      // Predicated region
      $region57: #{tpu_custom_call.1} parent=43 // pred_check
        %p382 = pneg %p131
      $region58: #{tpu_custom_call.1} parent=43 // pred_check_branch
        %384 = sbr.rel (%p382) target = $region60
      $region59: #{tpu_custom_call.1} parent=43 // pred_region
        %p385 = scmp.lt.s32.totalorder %s24, 1
        %s386 = scalar_select %p385, %s24, 1
        %s387 = smul.addr %s386, 16
        %s388 = smul.addr %s387, 8
        %s389 = scalar_lea.vmem %s3, %s388
      $region60: #{tpu_custom_call.1} parent=43 // pred_fallthru
        _
    $region44: #{tpu_custom_call.1} parent=5 // pred_fallthru
      _
    %p390 = scmp.le.s32.totalorder 1, %s17
    %p391 = scmp.lt.s32.totalorder %s17, 3
    %p392 = pnand %p390, %p391
    %p393 = pneg %p392
    // Predicated region
    $region61: #{tpu_custom_call.1} parent=5 // pred_check
      _
    $region62: #{tpu_custom_call.1} parent=5 // pred_check_branch
      %395 = sbr.rel (%p392) target = $region64
    $region63: #{tpu_custom_call.1} parent=5 // pred_region
      %s396 = ssub.s32 %s17, 1
      %s397 = smul.u32 2, %s27
      %p398 = scmp.lt.s32.totalorder %s26, 1
      %s399 = scalar_select %p398, %s26, 1
      %p400 = scmp.lt.s32.totalorder %s397, 1
      %s401 = scalar_select %p400, %s397, 1
      %s402 = smul.addr %s399, 2
      %s403 = sadd.s32 %s401, %s402
      %s404 = smul.addr %s403, 8
      %s405 = scalar_lea.vmem %s0, %s404
      %p406 = pneg %p57
      %p407 = pneg %p54
      %p408 = scmp.lt.s32.totalorder %s26, 1
      %s409 = scalar_select %p408, %s26, 1
      %s410 = smul.addr %s409, 4
      %s411 = scalar_lea.vmem %s1, %s410
      %p412 = pneg %p83
      %p413 = pneg %p80
      %p414 = scmp.lt.s32.totalorder %s26, 1
      %s415 = scalar_select %p414, %s26, 1
      %p416 = scmp.lt.s32.totalorder %s27, 0
      %s417 = scalar_select %p416, %s27, 0
      %s418 = sadd.s32 %s417, %s415
      %s419 = smul.addr %s418, 4
      %s420 = scalar_lea.vmem %s2, %s419
      %p421 = pneg %p111
      %p422 = pneg %p108
      %p423 = scmp.lt.s32.totalorder %s26, 1
      %s424 = scalar_select %p423, %s26, 1
      %s425 = smul.addr %s424, 16
      %s426 = smul.addr %s425, 8
      %s427 = scalar_lea.vmem %s3, %s426
      %p428 = pneg %p137
      %p429 = pneg %p134
      %p430 = pneg %p158
      %p431 = pneg %p155
      %p432 = pneg %p179
      %p433 = pneg %p176
      %p434 = pneg %p200
      %p435 = pneg %p197
      %p436 = pneg %p221
      %p437 = pneg %p218
      %p438 = pneg %p242
      %p439 = pneg %p239
      %p440 = pneg %p263
      %p441 = pneg %p260
      %p442 = pneg %p284
      %p443 = pneg %p281
      %p444 = pneg %p312
      %p445 = pneg %p309
      %p446 = scmp.lt.s32.totalorder %s26, 1
      %s447 = scalar_select %p446, %s26, 1
      %p448 = scmp.lt.s32.totalorder %s27, 0
      %s449 = scalar_select %p448, %s27, 0
      %s450 = smul.addr %s447, 4
      %s451 = sadd.s32 %s449, %s450
      %s452 = smul.addr %s451, 8
      %s453 = scalar_lea.vmem %s11, %s452
      %s454 = smul.u32 2, %s27
      %p455 = scmp.lt.s32.totalorder %s26, 1
      %s456 = scalar_select %p455, %s26, 1
      %p457 = scmp.lt.s32.totalorder %s454, 1
      %s458 = scalar_select %p457, %s454, 1
      %s459 = smul.addr %s456, 2
      %s460 = sadd.s32 %s458, %s459
      %s461 = smul.addr %s460, 8
      %s462 = scalar_lea.vmem %s0, %s461
      %s463 = smul.u32 2, %s27
      %p464 = scmp.lt.s32.totalorder %s26, 1
      %s465 = scalar_select %p464, %s26, 1
      %s466 = smul.addr %s465, 4
      %s467 = scalar_lea.vmem %s1, %s466
      %p468 = scmp.lt.s32.totalorder %s26, 1
      %s469 = scalar_select %p468, %s26, 1
      %p470 = scmp.lt.s32.totalorder %s27, 0
      %s471 = scalar_select %p470, %s27, 0
      %s472 = sadd.s32 %s471, %s469
      %s473 = smul.addr %s472, 4
      %s474 = scalar_lea.vmem %s2, %s473
      %p475 = scmp.lt.s32.totalorder %s26, 1
      %s476 = scalar_select %p475, %s26, 1
      %s477 = smul.addr %s476, 16
      %s478 = smul.addr %s477, 8
      %s479 = scalar_lea.vmem %s3, %s478
      %p480 = scmp.lt.s32.totalorder %s26, 1
      %s481 = scalar_select %p480, %s26, 1
      %p482 = scmp.lt.s32.totalorder %s27, 0
      %s483 = scalar_select %p482, %s27, 0
      %s484 = smul.addr %s481, 4
      %s485 = sadd.s32 %s483, %s484
      %s486 = smul.addr %s485, 8
      %s487 = scalar_lea.vmem %s11, %s486
      %v488 = vld [vmem:[%s462] sm:$0xff]
      %v489 = vld [vmem:[%s462 + $0x8] sm:$0xff]
      %v490 = vld [vmem:[%s467] sm:$0x7]
      %v491 = vld [vmem:[%s479] sm:$0xff]
      %v492 = vld [vmem:[%s479 + $0x8] sm:$0xff]
      %v493 = vld [vmem:[%s479 + $0x10] sm:$0xff]
      %v494 = vld [vmem:[%s479 + $0x18] sm:$0xff]
      %v495 = vld [vmem:[%s479 + $0x20] sm:$0xff]
      %v496 = vld [vmem:[%s479 + $0x28] sm:$0xff]
      %v497 = vld [vmem:[%s479 + $0x30] sm:$0xff]
      %v498 = vld [vmem:[%s479 + $0x38] sm:$0xff]
      %v499 = vld [vmem:[%s479 + $0x40] sm:$0xff]
      %v500 = vld [vmem:[%s479 + $0x48] sm:$0xff]
      %v501 = vld [vmem:[%s479 + $0x50] sm:$0xff]
      %v502 = vld [vmem:[%s479 + $0x58] sm:$0xff]
      %v503 = vld [vmem:[%s479 + $0x60] sm:$0xff]
      %v504 = vld [vmem:[%s479 + $0x68] sm:$0xff]
      %v505 = vld [vmem:[%s479 + $0x70] sm:$0xff]
      %v506 = vld [vmem:[%s479 + $0x78] sm:$0xff]
      %508 = vset.pattern.permute.xlu0 0
      %509 = vperm.xlu0 %508, %v488
      %v510 = vpop.permute.xlu0 %509
      %513 = vset.pattern.permute.xlu0 0
      %514 = vperm.xlu0 %513, %v489
      %v515 = vpop.permute.xlu0 %514
      %v517 = vlaneseq
      %v518 = vshrl.u32 %v517, 7
      %v519 = vsub.s32 0, %v518
      %v520 = vrot.slane %v490, %v519
      %v521 = vsub.f32 %v510, %v520
      %v522 = vsub.f32 %v515, %v520
      %523 = vset.pattern.permute.xlu0 1
      %524 = vperm.xlu0 %523, %v488
      %v525 = vpop.permute.xlu0 %524
      %527 = vset.pattern.permute.xlu0 1
      %528 = vperm.xlu0 %527, %v489
      %v529 = vpop.permute.xlu0 %528
      %v531 = vlaneseq
      %v532 = vshrl.u32 %v531, 7
      %v533 = vsub.s32 1, %v532
      %v534 = vrot.slane %v490, %v533
      %v535 = vsub.f32 %v525, %v534
      %v536 = vsub.f32 %v529, %v534
      %537 = vset.pattern.permute.xlu0 2
      %538 = vperm.xlu0 %537, %v488
      %v539 = vpop.permute.xlu0 %538
      %541 = vset.pattern.permute.xlu0 2
      %542 = vperm.xlu0 %541, %v489
      %v543 = vpop.permute.xlu0 %542
      %v545 = vlaneseq
      %v546 = vshrl.u32 %v545, 7
      %v547 = vsub.s32 2, %v546
      %v548 = vrot.slane %v490, %v547
      %v549 = vsub.f32 %v539, %v548
      %v550 = vsub.f32 %v543, %v548
      %v551 = vmul.f32 %v521, %v521
      %v552 = vmul.f32 %v522, %v522
      %v553 = vmul.f32 %v535, %v535
      %v554 = vmul.f32 %v536, %v536
      %v555 = vadd.f32 %v551, %v553
      %v556 = vadd.f32 %v552, %v554
      %v557 = vmul.f32 %v549, %v549
      %v558 = vmul.f32 %v550, %v550
      %v559 = vadd.f32 %v555, %v557
      %v560 = vadd.f32 %v556, %v558
      %v561 = vlaneseq
      %v562 = vand.u32 %v561, 127
      %v565 = vand.u32 %v559, 4294967168
      %v566 = vand.u32 %v560, 4294967168
      %v567 = vor.u32 %v565, %v562
      %v568 = vor.u32 %v566, %v562
      %v569 = vld [vmem:[%s4] sm:$0x7]
      %v570 = vld [vmem:[%s5] sm:$0x1]
      %v571 = vlaneseq
      %v572 = vshrl.u32 %v571, 7
      %v573 = vsub.s32 0, %v572
      %v574 = vrot.slane %v569, %v573
      %v575 = vmul.f32 %v510, %v574
      %v576 = vmul.f32 %v515, %v574
      %v577 = vlaneseq
      %v578 = vshrl.u32 %v577, 7
      %v579 = vsub.s32 1, %v578
      %v580 = vrot.slane %v569, %v579
      %v581 = vmul.f32 %v525, %v580
      %v582 = vmul.f32 %v529, %v580
      %v583 = vadd.f32 %v575, %v581
      %v584 = vadd.f32 %v576, %v582
      %v585 = vlaneseq
      %v586 = vshrl.u32 %v585, 7
      %v587 = vsub.s32 2, %v586
      %v588 = vrot.slane %v569, %v587
      %v589 = vmul.f32 %v539, %v588
      %v590 = vmul.f32 %v543, %v588
      %v591 = vadd.f32 %v583, %v589
      %v592 = vadd.f32 %v584, %v590
      %v594 = vlaneseq
      %v595 = vshrl.u32 %v594, 7
      %v596 = vsub.s32 0, %v595
      %v597 = vrot.slane %v570, %v596
      %v599 = vsub.f32 %v597, %v591
      %v600 = vsub.f32 %v597, %v592
      %v601 = vld [vmem:[%s6] sm:$0xff]
      %v602 = vld [vmem:[%s6 + $0x8] sm:$0xff]
      %v603 = vld [vmem:[%s7] sm:$0x1]
      %v604 = vand.u32 %v567, 65535
      %v605 = vshra.s32 %v567, 16
      %v606 = vcvt.s32.f32 %v604
      %v607 = vcvt.s32.f32 %v605
      %608 = vmin.xlane.f32.xlu0 %v607
      %v609 = vpop.xlane.xlu0 %608
      %vm610 = vcmp.eq.f32.partialorder %v607, %v609
      %v611 = vsel %vm610, %v606, inf
      %612 = vmin.xlane.f32.xlu0 %v611
      %v613 = vpop.xlane.xlu0 %612
      %v614 = vcvt.f32.s32 %v613
      %v615 = vcvt.f32.s32 %v609
      %v616 = vshll.u32 %v615, 16
      %v617 = vadd.s32 %v616, %v614
      %v618 = vand.u32 %v568, 65535
      %v619 = vshra.s32 %v568, 16
      %v620 = vcvt.s32.f32 %v618
      %v621 = vcvt.s32.f32 %v619
      %622 = vmin.xlane.f32.xlu0 %v621
      %v623 = vpop.xlane.xlu0 %622
      %vm624 = vcmp.eq.f32.partialorder %v621, %v623
      %v625 = vsel %vm624, %v620, inf
      %626 = vmin.xlane.f32.xlu0 %v625
      %v627 = vpop.xlane.xlu0 %626
      %v628 = vcvt.f32.s32 %v627
      %v629 = vcvt.f32.s32 %v623
      %v630 = vshll.u32 %v629, 16
      %v631 = vadd.s32 %v630, %v628
      %v632 = vand.u32 %v617, 127
      %v633 = vand.u32 %v631, 127
      %vm634 = vcmp.eq.s32.totalorder %v562, %v632
      %vm635 = vcmp.eq.s32.totalorder %v562, %v633
      %v636 = vsel %vm634, 2147483647, %v567
      %v637 = vsel %vm635, 2147483647, %v568
      %v638 = vsel %vm634, 1.0, 0.0
      %v639 = vsel %vm635, 1.0, 0.0
      %640 = vmatprep.subr.mxu0 0.0
      %641 = vmatpush1.msra.mxu0 %v491
      %642 = vmatprep.subr.mxu0 0.0
      %643 = vmatpush1.msra.mxu0 %v492
      %644 = vmatprep.subr.mxu0 0.0
      %645 = vmatpush1.msra.mxu0 %v493
      %646 = vmatprep.subr.mxu0 0.0
      %647 = vmatpush1.msra.mxu0 %v494
      %648 = vmatprep.subr.mxu0 0.0
      %649 = vmatpush1.msra.mxu0 %v495
      %650 = vmatprep.subr.mxu0 0.0
      %651 = vmatpush1.msra.mxu0 %v496
      %652 = vmatprep.subr.mxu0 0.0
      %653 = vmatpush1.msra.mxu0 %v497
      %654 = vmatprep.subr.mxu0 0.0
      %655 = vmatpush1.msra.mxu0 %v498
      %656 = vmatprep.subr.mxu0 0.0
      %657 = vmatpush1.msra.mxu0 %v499
      %658 = vmatprep.subr.mxu0 0.0
      %659 = vmatpush1.msra.mxu0 %v500
      %660 = vmatprep.subr.mxu0 0.0
      %661 = vmatpush1.msra.mxu0 %v501
      %662 = vmatprep.subr.mxu0 0.0
      %663 = vmatpush1.msra.mxu0 %v502
      %664 = vmatprep.subr.mxu0 0.0
      %665 = vmatpush1.msra.mxu0 %v503
      %666 = vmatprep.subr.mxu0 0.0
      %667 = vmatpush1.msra.mxu0 %v504
      %668 = vmatprep.subr.mxu0 0.0
      %669 = vmatpush1.msra.mxu0 %v505
      %670 = vmatprep.subr.mxu0 0.0
      %671 = vmatpush1.msra.mxu0 %v506
      %672 = vmatprep.subr.mxu0 0.0
      %673 = vmatpush1.msra.mxu0 0.0
      %674 = vmatprep.subr.mxu0 0.0
      %675 = vmatpush1.msra.mxu0 0.0
      %676 = vmatprep.subr.mxu0 0.0
      %677 = vmatpush1.msra.mxu0 0.0
      %678 = vmatprep.subr.mxu0 0.0
      %679 = vmatpush1.msra.mxu0 0.0
      %680 = vmatprep.subr.mxu0 0.0
      %681 = vmatpush1.msra.mxu0 0.0
      %682 = vmatprep.subr.mxu0 0.0
      %683 = vmatpush1.msra.mxu0 0.0
      %684 = vmatprep.subr.mxu0 0.0
      %685 = vmatpush1.msra.mxu0 0.0
      %686 = vmatprep.subr.mxu0 0.0
      %687 = vmatpush1.msra.mxu0 0.0
      %688 = vmatprep.subr.mxu0 0.0
      %689 = vmatpush1.msra.mxu0 0.0
      %690 = vmatprep.subr.mxu0 0.0
      %691 = vmatpush1.msra.mxu0 0.0
      %692 = vmatprep.subr.mxu0 0.0
      %693 = vmatpush1.msra.mxu0 0.0
      %694 = vmatprep.subr.mxu0 0.0
      %695 = vmatpush1.msra.mxu0 0.0
      %696 = vmatprep.subr.mxu0 0.0
      %697 = vmatpush1.msra.mxu0 0.0
      %698 = vmatprep.subr.mxu0 0.0
      %699 = vmatpush1.msra.mxu0 0.0
      %700 = vmatprep.subr.mxu0 0.0
      %701 = vmatpush1.msra.mxu0 0.0
      %702 = vmatprep.subr.mxu0 0.0
      %703 = vmatpush1.msra.mxu0 0.0
      %704 = vmatprep.mubr.f32.mxu0 0.0
      %705 = vmatmul.mubr.f32.gmra.mrb[0].mxu0 %v638
      %v706 = vpop.f32.mrb[0].mxu0
      %v707 = vadd.f32 %v599, %v706
      %v708 = vpop.f32.mrb[0].mxu0
      %709 = vmatprep.mubr.f32.mxu0 0.0
      %710 = vmatmul.mubr.f32.gmra.mrb[0].mxu0 %v639
      %v711 = vpop.f32.mrb[0].mxu0
      %v712 = vadd.f32 %v600, %v711
      %v713 = vpop.f32.mrb[0].mxu0
      %714 = vdwg.mxu0
      %v715 = vmax.f32 %v707, 0.0
      %v716 = vmax.f32 %v712, 0.0
      %v718 = vlaneseq
      %v719 = vshrl.u32 %v718, 7
      %v720 = vsub.s32 0, %v719
      %v721 = vrot.slane %v603, %v720
      %vm723 = vcmask 130048
      %v725 = vsel %vm723, %v715, 0
      %v728 = vsel %vm723, %v716, 0
      %730 = vmatprep.subr.mxu0 0.0
      %731 = vmatpush1.msra.mxu0 %v601
      %732 = vmatprep.subr.mxu0 0.0
      %733 = vmatpush1.msra.mxu0 %v602
      %734 = vmatprep.subr.mxu0 0.0
      %735 = vmatpush1.msra.mxu0 0.0
      %736 = vmatprep.subr.mxu0 0.0
      %737 = vmatpush1.msra.mxu0 0.0
      %738 = vmatprep.subr.mxu0 0.0
      %739 = vmatpush1.msra.mxu0 0.0
      %740 = vmatprep.subr.mxu0 0.0
      %741 = vmatpush1.msra.mxu0 0.0
      %742 = vmatprep.subr.mxu0 0.0
      %743 = vmatpush1.msra.mxu0 0.0
      %744 = vmatprep.subr.mxu0 0.0
      %745 = vmatpush1.msra.mxu0 0.0
      %746 = vmatprep.subr.mxu0 0.0
      %747 = vmatpush1.msra.mxu0 0.0
      %748 = vmatprep.subr.mxu0 0.0
      %749 = vmatpush1.msra.mxu0 0.0
      %750 = vmatprep.subr.mxu0 0.0
      %751 = vmatpush1.msra.mxu0 0.0
      %752 = vmatprep.subr.mxu0 0.0
      %753 = vmatpush1.msra.mxu0 0.0
      %754 = vmatprep.subr.mxu0 0.0
      %755 = vmatpush1.msra.mxu0 0.0
      %756 = vmatprep.subr.mxu0 0.0
      %757 = vmatpush1.msra.mxu0 0.0
      %758 = vmatprep.subr.mxu0 0.0
      %759 = vmatpush1.msra.mxu0 0.0
      %760 = vmatprep.subr.mxu0 0.0
      %761 = vmatpush1.msra.mxu0 0.0
      %762 = vmatprep.subr.mxu0 0.0
      %763 = vmatpush1.msra.mxu0 0.0
      %764 = vmatprep.subr.mxu0 0.0
      %765 = vmatpush1.msra.mxu0 0.0
      %766 = vmatprep.subr.mxu0 0.0
      %767 = vmatpush1.msra.mxu0 0.0
      %768 = vmatprep.subr.mxu0 0.0
      %769 = vmatpush1.msra.mxu0 0.0
      %770 = vmatprep.subr.mxu0 0.0
      %771 = vmatpush1.msra.mxu0 0.0
      %772 = vmatprep.subr.mxu0 0.0
      %773 = vmatpush1.msra.mxu0 0.0
      %774 = vmatprep.subr.mxu0 0.0
      %775 = vmatpush1.msra.mxu0 0.0
      %776 = vmatprep.subr.mxu0 0.0
      %777 = vmatpush1.msra.mxu0 0.0
      %778 = vmatprep.subr.mxu0 0.0
      %779 = vmatpush1.msra.mxu0 0.0
      %780 = vmatprep.subr.mxu0 0.0
      %781 = vmatpush1.msra.mxu0 0.0
      %782 = vmatprep.subr.mxu0 0.0
      %783 = vmatpush1.msra.mxu0 0.0
      %784 = vmatprep.subr.mxu0 0.0
      %785 = vmatpush1.msra.mxu0 0.0
      %786 = vmatprep.subr.mxu0 0.0
      %787 = vmatpush1.msra.mxu0 0.0
      %788 = vmatprep.subr.mxu0 0.0
      %789 = vmatpush1.msra.mxu0 0.0
      %790 = vmatprep.subr.mxu0 0.0
      %791 = vmatpush1.msra.mxu0 0.0
      %792 = vmatprep.subr.mxu0 0.0
      %793 = vmatpush1.msra.mxu0 0.0
      %794 = vmatprep.mubr.f32.mxu0 0.0
      %795 = vmatmul.mubr.f32.gmra.mrb[0].mxu0 %v725
      %v796 = vpop.f32.mrb[0].mxu0
      %v797 = vadd.f32 %v721, %v796
      %v798 = vpop.f32.mrb[0].mxu0
      %799 = vmatprep.mubr.f32.mxu0 0.0
      %800 = vmatmul.mubr.f32.gmra.mrb[0].mxu0 %v728
      %v801 = vpop.f32.mrb[0].mxu0
      %v802 = vadd.f32 %v721, %v801
      %v803 = vpop.f32.mrb[0].mxu0
      %804 = vdwg.mxu0
      %v805 = vmax.f32 %v797, 0.0
      %v806 = vmax.f32 %v802, 0.0
      %v807 = vand.u32 %v636, 65535
      %v808 = vshra.s32 %v636, 16
      %v809 = vcvt.s32.f32 %v807
      %v810 = vcvt.s32.f32 %v808
      %811 = vmin.xlane.f32.xlu0 %v810
      %v812 = vpop.xlane.xlu0 %811
      %vm813 = vcmp.eq.f32.partialorder %v810, %v812
      %v814 = vsel %vm813, %v809, inf
      %815 = vmin.xlane.f32.xlu0 %v814
      %v816 = vpop.xlane.xlu0 %815
      %v817 = vcvt.f32.s32 %v816
      %v818 = vcvt.f32.s32 %v812
      %v819 = vshll.u32 %v818, 16
      %v820 = vadd.s32 %v819, %v817
      %v821 = vand.u32 %v637, 65535
      %v822 = vshra.s32 %v637, 16
      %v823 = vcvt.s32.f32 %v821
      %v824 = vcvt.s32.f32 %v822
      %825 = vmin.xlane.f32.xlu0 %v824
      %v826 = vpop.xlane.xlu0 %825
      %vm827 = vcmp.eq.f32.partialorder %v824, %v826
      %v828 = vsel %vm827, %v823, inf
      %829 = vmin.xlane.f32.xlu0 %v828
      %v830 = vpop.xlane.xlu0 %829
      %v831 = vcvt.f32.s32 %v830
      %v832 = vcvt.f32.s32 %v826
      %v833 = vshll.u32 %v832, 16
      %v834 = vadd.s32 %v833, %v831
      %v835 = vand.u32 %v820, 127
      %v836 = vand.u32 %v834, 127
      %vm837 = vcmp.eq.s32.totalorder %v562, %v835
      %vm838 = vcmp.eq.s32.totalorder %v562, %v836
      %v839 = vsel %vm837, 2147483647, %v636
      %v840 = vsel %vm838, 2147483647, %v637
      %v841 = vsel %vm837, 1.0, 0.0
      %v842 = vsel %vm838, 1.0, 0.0
      %843 = vmatprep.subr.mxu0 0.0
      %844 = vmatpush1.msra.mxu0 %v491
      %845 = vmatprep.subr.mxu0 0.0
      %846 = vmatpush1.msra.mxu0 %v492
      %847 = vmatprep.subr.mxu0 0.0
      %848 = vmatpush1.msra.mxu0 %v493
      %849 = vmatprep.subr.mxu0 0.0
      %850 = vmatpush1.msra.mxu0 %v494
      %851 = vmatprep.subr.mxu0 0.0
      %852 = vmatpush1.msra.mxu0 %v495
      %853 = vmatprep.subr.mxu0 0.0
      %854 = vmatpush1.msra.mxu0 %v496
      %855 = vmatprep.subr.mxu0 0.0
      %856 = vmatpush1.msra.mxu0 %v497
      %857 = vmatprep.subr.mxu0 0.0
      %858 = vmatpush1.msra.mxu0 %v498
      %859 = vmatprep.subr.mxu0 0.0
      %860 = vmatpush1.msra.mxu0 %v499
      %861 = vmatprep.subr.mxu0 0.0
      %862 = vmatpush1.msra.mxu0 %v500
      %863 = vmatprep.subr.mxu0 0.0
      %864 = vmatpush1.msra.mxu0 %v501
      %865 = vmatprep.subr.mxu0 0.0
      %866 = vmatpush1.msra.mxu0 %v502
      %867 = vmatprep.subr.mxu0 0.0
      %868 = vmatpush1.msra.mxu0 %v503
      %869 = vmatprep.subr.mxu0 0.0
      %870 = vmatpush1.msra.mxu0 %v504
      %871 = vmatprep.subr.mxu0 0.0
      %872 = vmatpush1.msra.mxu0 %v505
      %873 = vmatprep.subr.mxu0 0.0
      %874 = vmatpush1.msra.mxu0 %v506
      %875 = vmatprep.subr.mxu0 0.0
      %876 = vmatpush1.msra.mxu0 0.0
      %877 = vmatprep.subr.mxu0 0.0
      %878 = vmatpush1.msra.mxu0 0.0
      %879 = vmatprep.subr.mxu0 0.0
      %880 = vmatpush1.msra.mxu0 0.0
      %881 = vmatprep.subr.mxu0 0.0
      %882 = vmatpush1.msra.mxu0 0.0
      %883 = vmatprep.subr.mxu0 0.0
      %884 = vmatpush1.msra.mxu0 0.0
      %885 = vmatprep.subr.mxu0 0.0
      %886 = vmatpush1.msra.mxu0 0.0
      %887 = vmatprep.subr.mxu0 0.0
      %888 = vmatpush1.msra.mxu0 0.0
      %889 = vmatprep.subr.mxu0 0.0
      %890 = vmatpush1.msra.mxu0 0.0
      %891 = vmatprep.subr.mxu0 0.0
      %892 = vmatpush1.msra.mxu0 0.0
      %893 = vmatprep.subr.mxu0 0.0
      %894 = vmatpush1.msra.mxu0 0.0
      %895 = vmatprep.subr.mxu0 0.0
      %896 = vmatpush1.msra.mxu0 0.0
      %897 = vmatprep.subr.mxu0 0.0
      %898 = vmatpush1.msra.mxu0 0.0
      %899 = vmatprep.subr.mxu0 0.0
      %900 = vmatpush1.msra.mxu0 0.0
      %901 = vmatprep.subr.mxu0 0.0
      %902 = vmatpush1.msra.mxu0 0.0
      %903 = vmatprep.subr.mxu0 0.0
      %904 = vmatpush1.msra.mxu0 0.0
      %905 = vmatprep.subr.mxu0 0.0
      %906 = vmatpush1.msra.mxu0 0.0
      %907 = vmatprep.mubr.f32.mxu0 0.0
      %908 = vmatmul.mubr.f32.gmra.mrb[0].mxu0 %v841
      %v909 = vpop.f32.mrb[0].mxu0
      %v910 = vadd.f32 %v599, %v909
      %v911 = vpop.f32.mrb[0].mxu0
      %912 = vmatprep.mubr.f32.mxu0 0.0
      %913 = vmatmul.mubr.f32.gmra.mrb[0].mxu0 %v842
      %v914 = vpop.f32.mrb[0].mxu0
      %v915 = vadd.f32 %v600, %v914
      %v916 = vpop.f32.mrb[0].mxu0
      %917 = vdwg.mxu0
      %v918 = vmax.f32 %v910, 0.0
      %v919 = vmax.f32 %v915, 0.0
      %v921 = vsel %vm723, %v918, 0
      %v924 = vsel %vm723, %v919, 0
      %926 = vmatprep.subr.mxu0 0.0
      %927 = vmatpush1.msra.mxu0 %v601
      %928 = vmatprep.subr.mxu0 0.0
      %929 = vmatpush1.msra.mxu0 %v602
      %930 = vmatprep.subr.mxu0 0.0
      %931 = vmatpush1.msra.mxu0 0.0
      %932 = vmatprep.subr.mxu0 0.0
      %933 = vmatpush1.msra.mxu0 0.0
      %934 = vmatprep.subr.mxu0 0.0
      %935 = vmatpush1.msra.mxu0 0.0
      %936 = vmatprep.subr.mxu0 0.0
      %937 = vmatpush1.msra.mxu0 0.0
      %938 = vmatprep.subr.mxu0 0.0
      %939 = vmatpush1.msra.mxu0 0.0
      %940 = vmatprep.subr.mxu0 0.0
      %941 = vmatpush1.msra.mxu0 0.0
      %942 = vmatprep.subr.mxu0 0.0
      %943 = vmatpush1.msra.mxu0 0.0
      %944 = vmatprep.subr.mxu0 0.0
      %945 = vmatpush1.msra.mxu0 0.0
      %946 = vmatprep.subr.mxu0 0.0
      %947 = vmatpush1.msra.mxu0 0.0
      %948 = vmatprep.subr.mxu0 0.0
      %949 = vmatpush1.msra.mxu0 0.0
      %950 = vmatprep.subr.mxu0 0.0
      %951 = vmatpush1.msra.mxu0 0.0
      %952 = vmatprep.subr.mxu0 0.0
      %953 = vmatpush1.msra.mxu0 0.0
      %954 = vmatprep.subr.mxu0 0.0
      %955 = vmatpush1.msra.mxu0 0.0
      %956 = vmatprep.subr.mxu0 0.0
      %957 = vmatpush1.msra.mxu0 0.0
      %958 = vmatprep.subr.mxu0 0.0
      %959 = vmatpush1.msra.mxu0 0.0
      %960 = vmatprep.subr.mxu0 0.0
      %961 = vmatpush1.msra.mxu0 0.0
      %962 = vmatprep.subr.mxu0 0.0
      %963 = vmatpush1.msra.mxu0 0.0
      %964 = vmatprep.subr.mxu0 0.0
      %965 = vmatpush1.msra.mxu0 0.0
      %966 = vmatprep.subr.mxu0 0.0
      %967 = vmatpush1.msra.mxu0 0.0
      %968 = vmatprep.subr.mxu0 0.0
      %969 = vmatpush1.msra.mxu0 0.0
      %970 = vmatprep.subr.mxu0 0.0
      %971 = vmatpush1.msra.mxu0 0.0
      %972 = vmatprep.subr.mxu0 0.0
      %973 = vmatpush1.msra.mxu0 0.0
      %974 = vmatprep.subr.mxu0 0.0
      %975 = vmatpush1.msra.mxu0 0.0
      %976 = vmatprep.subr.mxu0 0.0
      %977 = vmatpush1.msra.mxu0 0.0
      %978 = vmatprep.subr.mxu0 0.0
      %979 = vmatpush1.msra.mxu0 0.0
      %980 = vmatprep.subr.mxu0 0.0
      %981 = vmatpush1.msra.mxu0 0.0
      %982 = vmatprep.subr.mxu0 0.0
      %983 = vmatpush1.msra.mxu0 0.0
      %984 = vmatprep.subr.mxu0 0.0
      %985 = vmatpush1.msra.mxu0 0.0
      %986 = vmatprep.subr.mxu0 0.0
      %987 = vmatpush1.msra.mxu0 0.0
      %988 = vmatprep.subr.mxu0 0.0
      %989 = vmatpush1.msra.mxu0 0.0
      %990 = vmatprep.mubr.f32.mxu0 0.0
      %991 = vmatmul.mubr.f32.gmra.mrb[0].mxu0 %v921
      %v992 = vpop.f32.mrb[0].mxu0
      %v993 = vadd.f32 %v721, %v992
      %v994 = vpop.f32.mrb[0].mxu0
      %995 = vmatprep.mubr.f32.mxu0 0.0
      %996 = vmatmul.mubr.f32.gmra.mrb[0].mxu0 %v924
      %v997 = vpop.f32.mrb[0].mxu0
      %v998 = vadd.f32 %v721, %v997
      %v999 = vpop.f32.mrb[0].mxu0
      %1000 = vdwg.mxu0
      %v1001 = vmax.f32 %v993, 0.0
      %v1002 = vmax.f32 %v998, 0.0
      %v1003 = vmax.f32 %v805, %v1001
      %v1004 = vmax.f32 %v806, %v1002
      %v1005 = vand.u32 %v839, 65535
      %v1006 = vshra.s32 %v839, 16
      %v1007 = vcvt.s32.f32 %v1005
      %v1008 = vcvt.s32.f32 %v1006
      %1009 = vmin.xlane.f32.xlu0 %v1008
      %v1010 = vpop.xlane.xlu0 %1009
      %vm1011 = vcmp.eq.f32.partialorder %v1008, %v1010
      %v1012 = vsel %vm1011, %v1007, inf
      %1013 = vmin.xlane.f32.xlu0 %v1012
      %v1014 = vpop.xlane.xlu0 %1013
      %v1015 = vcvt.f32.s32 %v1014
      %v1016 = vcvt.f32.s32 %v1010
      %v1017 = vshll.u32 %v1016, 16
      %v1018 = vadd.s32 %v1017, %v1015
      %v1019 = vand.u32 %v840, 65535
      %v1020 = vshra.s32 %v840, 16
      %v1021 = vcvt.s32.f32 %v1019
      %v1022 = vcvt.s32.f32 %v1020
      %1023 = vmin.xlane.f32.xlu0 %v1022
      %v1024 = vpop.xlane.xlu0 %1023
      %vm1025 = vcmp.eq.f32.partialorder %v1022, %v1024
      %v1026 = vsel %vm1025, %v1021, inf
      %1027 = vmin.xlane.f32.xlu0 %v1026
      %v1028 = vpop.xlane.xlu0 %1027
      %v1029 = vcvt.f32.s32 %v1028
      %v1030 = vcvt.f32.s32 %v1024
      %v1031 = vshll.u32 %v1030, 16
      %v1032 = vadd.s32 %v1031, %v1029
      %v1033 = vand.u32 %v1018, 127
      %v1034 = vand.u32 %v1032, 127
      %vm1035 = vcmp.eq.s32.totalorder %v562, %v1033
      %vm1036 = vcmp.eq.s32.totalorder %v562, %v1034
      %v1037 = vsel %vm1035, 2147483647, %v839
      %v1038 = vsel %vm1036, 2147483647, %v840
      %v1039 = vsel %vm1035, 1.0, 0.0
      %v1040 = vsel %vm1036, 1.0, 0.0
      %1041 = vmatprep.subr.mxu0 0.0
      %1042 = vmatpush1.msra.mxu0 %v491
      %1043 = vmatprep.subr.mxu0 0.0
      %1044 = vmatpush1.msra.mxu0 %v492
      %1045 = vmatprep.subr.mxu0 0.0
      %1046 = vmatpush1.msra.mxu0 %v493
      %1047 = vmatprep.subr.mxu0 0.0
      %1048 = vmatpush1.msra.mxu0 %v494
      %1049 = vmatprep.subr.mxu0 0.0
      %1050 = vmatpush1.msra.mxu0 %v495
      %1051 = vmatprep.subr.mxu0 0.0
      %1052 = vmatpush1.msra.mxu0 %v496
      %1053 = vmatprep.subr.mxu0 0.0
      %1054 = vmatpush1.msra.mxu0 %v497
      %1055 = vmatprep.subr.mxu0 0.0
      %1056 = vmatpush1.msra.mxu0 %v498
      %1057 = vmatprep.subr.mxu0 0.0
      %1058 = vmatpush1.msra.mxu0 %v499
      %1059 = vmatprep.subr.mxu0 0.0
      %1060 = vmatpush1.msra.mxu0 %v500
      %1061 = vmatprep.subr.mxu0 0.0
      %1062 = vmatpush1.msra.mxu0 %v501
      %1063 = vmatprep.subr.mxu0 0.0
      %1064 = vmatpush1.msra.mxu0 %v502
      %1065 = vmatprep.subr.mxu0 0.0
      %1066 = vmatpush1.msra.mxu0 %v503
      %1067 = vmatprep.subr.mxu0 0.0
      %1068 = vmatpush1.msra.mxu0 %v504
      %1069 = vmatprep.subr.mxu0 0.0
      %1070 = vmatpush1.msra.mxu0 %v505
      %1071 = vmatprep.subr.mxu0 0.0
      %1072 = vmatpush1.msra.mxu0 %v506
      %1073 = vmatprep.subr.mxu0 0.0
      %1074 = vmatpush1.msra.mxu0 0.0
      %1075 = vmatprep.subr.mxu0 0.0
      %1076 = vmatpush1.msra.mxu0 0.0
      %1077 = vmatprep.subr.mxu0 0.0
      %1078 = vmatpush1.msra.mxu0 0.0
      %1079 = vmatprep.subr.mxu0 0.0
      %1080 = vmatpush1.msra.mxu0 0.0
      %1081 = vmatprep.subr.mxu0 0.0
      %1082 = vmatpush1.msra.mxu0 0.0
      %1083 = vmatprep.subr.mxu0 0.0
      %1084 = vmatpush1.msra.mxu0 0.0
      %1085 = vmatprep.subr.mxu0 0.0
      %1086 = vmatpush1.msra.mxu0 0.0
      %1087 = vmatprep.subr.mxu0 0.0
      %1088 = vmatpush1.msra.mxu0 0.0
      %1089 = vmatprep.subr.mxu0 0.0
      %1090 = vmatpush1.msra.mxu0 0.0
      %1091 = vmatprep.subr.mxu0 0.0
      %1092 = vmatpush1.msra.mxu0 0.0
      %1093 = vmatprep.subr.mxu0 0.0
      %1094 = vmatpush1.msra.mxu0 0.0
      %1095 = vmatprep.subr.mxu0 0.0
      %1096 = vmatpush1.msra.mxu0 0.0
      %1097 = vmatprep.subr.mxu0 0.0
      %1098 = vmatpush1.msra.mxu0 0.0
      %1099 = vmatprep.subr.mxu0 0.0
      %1100 = vmatpush1.msra.mxu0 0.0
      %1101 = vmatprep.subr.mxu0 0.0
      %1102 = vmatpush1.msra.mxu0 0.0
      %1103 = vmatprep.subr.mxu0 0.0
      %1104 = vmatpush1.msra.mxu0 0.0
      %1105 = vmatprep.mubr.f32.mxu0 0.0
      %1106 = vmatmul.mubr.f32.gmra.mrb[0].mxu0 %v1039
      %v1107 = vpop.f32.mrb[0].mxu0
      %v1108 = vadd.f32 %v599, %v1107
      %v1109 = vpop.f32.mrb[0].mxu0
      %1110 = vmatprep.mubr.f32.mxu0 0.0
      %1111 = vmatmul.mubr.f32.gmra.mrb[0].mxu0 %v1040
      %v1112 = vpop.f32.mrb[0].mxu0
      %v1113 = vadd.f32 %v600, %v1112
      %v1114 = vpop.f32.mrb[0].mxu0
      %1115 = vdwg.mxu0
      %v1116 = vmax.f32 %v1108, 0.0
      %v1117 = vmax.f32 %v1113, 0.0
      %v1119 = vsel %vm723, %v1116, 0
      %v1122 = vsel %vm723, %v1117, 0
      %1124 = vmatprep.subr.mxu0 0.0
      %1125 = vmatpush1.msra.mxu0 %v601
      %1126 = vmatprep.subr.mxu0 0.0
      %1127 = vmatpush1.msra.mxu0 %v602
      %1128 = vmatprep.subr.mxu0 0.0
      %1129 = vmatpush1.msra.mxu0 0.0
      %1130 = vmatprep.subr.mxu0 0.0
      %1131 = vmatpush1.msra.mxu0 0.0
      %1132 = vmatprep.subr.mxu0 0.0
      %1133 = vmatpush1.msra.mxu0 0.0
      %1134 = vmatprep.subr.mxu0 0.0
      %1135 = vmatpush1.msra.mxu0 0.0
      %1136 = vmatprep.subr.mxu0 0.0
      %1137 = vmatpush1.msra.mxu0 0.0
      %1138 = vmatprep.subr.mxu0 0.0
      %1139 = vmatpush1.msra.mxu0 0.0
      %1140 = vmatprep.subr.mxu0 0.0
      %1141 = vmatpush1.msra.mxu0 0.0
      %1142 = vmatprep.subr.mxu0 0.0
      %1143 = vmatpush1.msra.mxu0 0.0
      %1144 = vmatprep.subr.mxu0 0.0
      %1145 = vmatpush1.msra.mxu0 0.0
      %1146 = vmatprep.subr.mxu0 0.0
      %1147 = vmatpush1.msra.mxu0 0.0
      %1148 = vmatprep.subr.mxu0 0.0
      %1149 = vmatpush1.msra.mxu0 0.0
      %1150 = vmatprep.subr.mxu0 0.0
      %1151 = vmatpush1.msra.mxu0 0.0
      %1152 = vmatprep.subr.mxu0 0.0
      %1153 = vmatpush1.msra.mxu0 0.0
      %1154 = vmatprep.subr.mxu0 0.0
      %1155 = vmatpush1.msra.mxu0 0.0
      %1156 = vmatprep.subr.mxu0 0.0
      %1157 = vmatpush1.msra.mxu0 0.0
      %1158 = vmatprep.subr.mxu0 0.0
      %1159 = vmatpush1.msra.mxu0 0.0
      %1160 = vmatprep.subr.mxu0 0.0
      %1161 = vmatpush1.msra.mxu0 0.0
      %1162 = vmatprep.subr.mxu0 0.0
      %1163 = vmatpush1.msra.mxu0 0.0
      %1164 = vmatprep.subr.mxu0 0.0
      %1165 = vmatpush1.msra.mxu0 0.0
      %1166 = vmatprep.subr.mxu0 0.0
      %1167 = vmatpush1.msra.mxu0 0.0
      %1168 = vmatprep.subr.mxu0 0.0
      %1169 = vmatpush1.msra.mxu0 0.0
      %1170 = vmatprep.subr.mxu0 0.0
      %1171 = vmatpush1.msra.mxu0 0.0
      %1172 = vmatprep.subr.mxu0 0.0
      %1173 = vmatpush1.msra.mxu0 0.0
      %1174 = vmatprep.subr.mxu0 0.0
      %1175 = vmatpush1.msra.mxu0 0.0
      %1176 = vmatprep.subr.mxu0 0.0
      %1177 = vmatpush1.msra.mxu0 0.0
      %1178 = vmatprep.subr.mxu0 0.0
      %1179 = vmatpush1.msra.mxu0 0.0
      %1180 = vmatprep.subr.mxu0 0.0
      %1181 = vmatpush1.msra.mxu0 0.0
      %1182 = vmatprep.subr.mxu0 0.0
      %1183 = vmatpush1.msra.mxu0 0.0
      %1184 = vmatprep.subr.mxu0 0.0
      %1185 = vmatpush1.msra.mxu0 0.0
      %1186 = vmatprep.subr.mxu0 0.0
      %1187 = vmatpush1.msra.mxu0 0.0
      %1188 = vmatprep.mubr.f32.mxu0 0.0
      %1189 = vmatmul.mubr.f32.gmra.mrb[0].mxu0 %v1119
      %v1190 = vpop.f32.mrb[0].mxu0
      %v1191 = vadd.f32 %v721, %v1190
      %v1192 = vpop.f32.mrb[0].mxu0
      %1193 = vmatprep.mubr.f32.mxu0 0.0
      %1194 = vmatmul.mubr.f32.gmra.mrb[0].mxu0 %v1122
      %v1195 = vpop.f32.mrb[0].mxu0
      %v1196 = vadd.f32 %v721, %v1195
      %v1197 = vpop.f32.mrb[0].mxu0
      %1198 = vdwg.mxu0
      %v1199 = vmax.f32 %v1191, 0.0
      %v1200 = vmax.f32 %v1196, 0.0
      %v1201 = vmax.f32 %v1003, %v1199
      %v1202 = vmax.f32 %v1004, %v1200
      %v1203 = vand.u32 %v1037, 65535
      %v1204 = vshra.s32 %v1037, 16
      %v1205 = vcvt.s32.f32 %v1203
      %v1206 = vcvt.s32.f32 %v1204
      %1207 = vmin.xlane.f32.xlu0 %v1206
      %v1208 = vpop.xlane.xlu0 %1207
      %vm1209 = vcmp.eq.f32.partialorder %v1206, %v1208
      %v1210 = vsel %vm1209, %v1205, inf
      %1211 = vmin.xlane.f32.xlu0 %v1210
      %v1212 = vpop.xlane.xlu0 %1211
      %v1213 = vcvt.f32.s32 %v1212
      %v1214 = vcvt.f32.s32 %v1208
      %v1215 = vshll.u32 %v1214, 16
      %v1216 = vadd.s32 %v1215, %v1213
      %v1217 = vand.u32 %v1038, 65535
      %v1218 = vshra.s32 %v1038, 16
      %v1219 = vcvt.s32.f32 %v1217
      %v1220 = vcvt.s32.f32 %v1218
      %1221 = vmin.xlane.f32.xlu0 %v1220
      %v1222 = vpop.xlane.xlu0 %1221
      %vm1223 = vcmp.eq.f32.partialorder %v1220, %v1222
      %v1224 = vsel %vm1223, %v1219, inf
      %1225 = vmin.xlane.f32.xlu0 %v1224
      %v1226 = vpop.xlane.xlu0 %1225
      %v1227 = vcvt.f32.s32 %v1226
      %v1228 = vcvt.f32.s32 %v1222
      %v1229 = vshll.u32 %v1228, 16
      %v1230 = vadd.s32 %v1229, %v1227
      %v1231 = vand.u32 %v1216, 127
      %v1232 = vand.u32 %v1230, 127
      %vm1233 = vcmp.eq.s32.totalorder %v562, %v1231
      %vm1234 = vcmp.eq.s32.totalorder %v562, %v1232
      %v1235 = vsel %vm1233, 1.0, 0.0
      %v1236 = vsel %vm1234, 1.0, 0.0
      %1237 = vmatprep.subr.mxu0 0.0
      %1238 = vmatpush1.msra.mxu0 %v491
      %1239 = vmatprep.subr.mxu0 0.0
      %1240 = vmatpush1.msra.mxu0 %v492
      %1241 = vmatprep.subr.mxu0 0.0
      %1242 = vmatpush1.msra.mxu0 %v493
      %1243 = vmatprep.subr.mxu0 0.0
      %1244 = vmatpush1.msra.mxu0 %v494
      %1245 = vmatprep.subr.mxu0 0.0
      %1246 = vmatpush1.msra.mxu0 %v495
      %1247 = vmatprep.subr.mxu0 0.0
      %1248 = vmatpush1.msra.mxu0 %v496
      %1249 = vmatprep.subr.mxu0 0.0
      %1250 = vmatpush1.msra.mxu0 %v497
      %1251 = vmatprep.subr.mxu0 0.0
      %1252 = vmatpush1.msra.mxu0 %v498
      %1253 = vmatprep.subr.mxu0 0.0
      %1254 = vmatpush1.msra.mxu0 %v499
      %1255 = vmatprep.subr.mxu0 0.0
      %1256 = vmatpush1.msra.mxu0 %v500
      %1257 = vmatprep.subr.mxu0 0.0
      %1258 = vmatpush1.msra.mxu0 %v501
      %1259 = vmatprep.subr.mxu0 0.0
      %1260 = vmatpush1.msra.mxu0 %v502
      %1261 = vmatprep.subr.mxu0 0.0
      %1262 = vmatpush1.msra.mxu0 %v503
      %1263 = vmatprep.subr.mxu0 0.0
      %1264 = vmatpush1.msra.mxu0 %v504
      %1265 = vmatprep.subr.mxu0 0.0
      %1266 = vmatpush1.msra.mxu0 %v505
      %1267 = vmatprep.subr.mxu0 0.0
      %1268 = vmatpush1.msra.mxu0 %v506
      %1269 = vmatprep.subr.mxu0 0.0
      %1270 = vmatpush1.msra.mxu0 0.0
      %1271 = vmatprep.subr.mxu0 0.0
      %1272 = vmatpush1.msra.mxu0 0.0
      %1273 = vmatprep.subr.mxu0 0.0
      %1274 = vmatpush1.msra.mxu0 0.0
      %1275 = vmatprep.subr.mxu0 0.0
      %1276 = vmatpush1.msra.mxu0 0.0
      %1277 = vmatprep.subr.mxu0 0.0
      %1278 = vmatpush1.msra.mxu0 0.0
      %1279 = vmatprep.subr.mxu0 0.0
      %1280 = vmatpush1.msra.mxu0 0.0
      %1281 = vmatprep.subr.mxu0 0.0
      %1282 = vmatpush1.msra.mxu0 0.0
      %1283 = vmatprep.subr.mxu0 0.0
      %1284 = vmatpush1.msra.mxu0 0.0
      %1285 = vmatprep.subr.mxu0 0.0
      %1286 = vmatpush1.msra.mxu0 0.0
      %1287 = vmatprep.subr.mxu0 0.0
      %1288 = vmatpush1.msra.mxu0 0.0
      %1289 = vmatprep.subr.mxu0 0.0
      %1290 = vmatpush1.msra.mxu0 0.0
      %1291 = vmatprep.subr.mxu0 0.0
      %1292 = vmatpush1.msra.mxu0 0.0
      %1293 = vmatprep.subr.mxu0 0.0
      %1294 = vmatpush1.msra.mxu0 0.0
      %1295 = vmatprep.subr.mxu0 0.0
      %1296 = vmatpush1.msra.mxu0 0.0
      %1297 = vmatprep.subr.mxu0 0.0
      %1298 = vmatpush1.msra.mxu0 0.0
      %1299 = vmatprep.subr.mxu0 0.0
      %1300 = vmatpush1.msra.mxu0 0.0
      %1301 = vmatprep.mubr.f32.mxu0 0.0
      %1302 = vmatmul.mubr.f32.gmra.mrb[0].mxu0 %v1235
      %v1303 = vpop.f32.mrb[0].mxu0
      %v1304 = vadd.f32 %v599, %v1303
      %v1305 = vpop.f32.mrb[0].mxu0
      %1306 = vmatprep.mubr.f32.mxu0 0.0
      %1307 = vmatmul.mubr.f32.gmra.mrb[0].mxu0 %v1236
      %v1308 = vpop.f32.mrb[0].mxu0
      %v1309 = vadd.f32 %v600, %v1308
      %v1310 = vpop.f32.mrb[0].mxu0
      %1311 = vdwg.mxu0
      %v1312 = vmax.f32 %v1304, 0.0
      %v1313 = vmax.f32 %v1309, 0.0
      %v1315 = vsel %vm723, %v1312, 0
      %v1318 = vsel %vm723, %v1313, 0
      %1320 = vmatprep.subr.mxu0 0.0
      %1321 = vmatpush1.msra.mxu0 %v601
      %1322 = vmatprep.subr.mxu0 0.0
      %1323 = vmatpush1.msra.mxu0 %v602
      %1324 = vmatprep.subr.mxu0 0.0
      %1325 = vmatpush1.msra.mxu0 0.0
      %1326 = vmatprep.subr.mxu0 0.0
      %1327 = vmatpush1.msra.mxu0 0.0
      %1328 = vmatprep.subr.mxu0 0.0
      %1329 = vmatpush1.msra.mxu0 0.0
      %1330 = vmatprep.subr.mxu0 0.0
      %1331 = vmatpush1.msra.mxu0 0.0
      %1332 = vmatprep.subr.mxu0 0.0
      %1333 = vmatpush1.msra.mxu0 0.0
      %1334 = vmatprep.subr.mxu0 0.0
      %1335 = vmatpush1.msra.mxu0 0.0
      %1336 = vmatprep.subr.mxu0 0.0
      %1337 = vmatpush1.msra.mxu0 0.0
      %1338 = vmatprep.subr.mxu0 0.0
      %1339 = vmatpush1.msra.mxu0 0.0
      %1340 = vmatprep.subr.mxu0 0.0
      %1341 = vmatpush1.msra.mxu0 0.0
      %1342 = vmatprep.subr.mxu0 0.0
      %1343 = vmatpush1.msra.mxu0 0.0
      %1344 = vmatprep.subr.mxu0 0.0
      %1345 = vmatpush1.msra.mxu0 0.0
      %1346 = vmatprep.subr.mxu0 0.0
      %1347 = vmatpush1.msra.mxu0 0.0
      %1348 = vmatprep.subr.mxu0 0.0
      %1349 = vmatpush1.msra.mxu0 0.0
      %1350 = vmatprep.subr.mxu0 0.0
      %1351 = vmatpush1.msra.mxu0 0.0
      %1352 = vmatprep.subr.mxu0 0.0
      %1353 = vmatpush1.msra.mxu0 0.0
      %1354 = vmatprep.subr.mxu0 0.0
      %1355 = vmatpush1.msra.mxu0 0.0
      %1356 = vmatprep.subr.mxu0 0.0
      %1357 = vmatpush1.msra.mxu0 0.0
      %1358 = vmatprep.subr.mxu0 0.0
      %1359 = vmatpush1.msra.mxu0 0.0
      %1360 = vmatprep.subr.mxu0 0.0
      %1361 = vmatpush1.msra.mxu0 0.0
      %1362 = vmatprep.subr.mxu0 0.0
      %1363 = vmatpush1.msra.mxu0 0.0
      %1364 = vmatprep.subr.mxu0 0.0
      %1365 = vmatpush1.msra.mxu0 0.0
      %1366 = vmatprep.subr.mxu0 0.0
      %1367 = vmatpush1.msra.mxu0 0.0
      %1368 = vmatprep.subr.mxu0 0.0
      %1369 = vmatpush1.msra.mxu0 0.0
      %1370 = vmatprep.subr.mxu0 0.0
      %1371 = vmatpush1.msra.mxu0 0.0
      %1372 = vmatprep.subr.mxu0 0.0
      %1373 = vmatpush1.msra.mxu0 0.0
      %1374 = vmatprep.subr.mxu0 0.0
      %1375 = vmatpush1.msra.mxu0 0.0
      %1376 = vmatprep.subr.mxu0 0.0
      %1377 = vmatpush1.msra.mxu0 0.0
      %1378 = vmatprep.subr.mxu0 0.0
      %1379 = vmatpush1.msra.mxu0 0.0
      %1380 = vmatprep.subr.mxu0 0.0
      %1381 = vmatpush1.msra.mxu0 0.0
      %1382 = vmatprep.subr.mxu0 0.0
      %1383 = vmatpush1.msra.mxu0 0.0
      %1384 = vmatprep.mubr.f32.mxu0 0.0
      %1385 = vmatmul.mubr.f32.gmra.mrb[0].mxu0 %v1315
      %v1386 = vpop.f32.mrb[0].mxu0
      %v1387 = vadd.f32 %v721, %v1386
      %v1388 = vpop.f32.mrb[0].mxu0
      %1389 = vmatprep.mubr.f32.mxu0 0.0
      %1390 = vmatmul.mubr.f32.gmra.mrb[0].mxu0 %v1318
      %v1391 = vpop.f32.mrb[0].mxu0
      %v1392 = vadd.f32 %v721, %v1391
      %v1393 = vpop.f32.mrb[0].mxu0
      %1394 = vdwg.mxu0
      %v1395 = vmax.f32 %v1387, 0.0
      %v1396 = vmax.f32 %v1392, 0.0
      %v1397 = vmax.f32 %v1201, %v1395
      %v1398 = vmax.f32 %v1202, %v1396
      %v1399 = vld [vmem:[%s474] sm:$0xf]
      %v1400 = vld [vmem:[%s8] sm:$0xff]
      %v1401 = vld [vmem:[%s8 + $0x8] sm:$0xff]
      %v1402 = vld [vmem:[%s8 + $0x10] sm:$0xff]
      %v1403 = vld [vmem:[%s8 + $0x18] sm:$0xff]
      %v1404 = vld [vmem:[%s9] sm:$0xff]
      %v1405 = vld [vmem:[%s9 + $0x8] sm:$0xff]
      %v1406 = vld [vmem:[%s9 + $0x10] sm:$0xff]
      %v1407 = vld [vmem:[%s9 + $0x18] sm:$0xff]
      %v1408 = vld [vmem:[%s10] sm:$0xff]
      %v1409 = vld [vmem:[%s10 + $0x8] sm:$0xff]
      %v1410 = vld [vmem:[%s10 + $0x10] sm:$0xff]
      %v1411 = vld [vmem:[%s10 + $0x18] sm:$0xff]
      %vm1412 = vcmask 31744
      %v1414 = vsel %vm1412, %v1404, 0
      %v1417 = vsel %vm1412, %v1405, 0
      %v1420 = vsel %vm1412, %v1406, 0
      %v1423 = vsel %vm1412, %v1407, 0
      %vm1425 = vcmask 1043456
      %v1427 = vsel %vm1425, %v1399, 0
      %1429 = vmatprep.subr.mxu0 0.0
      %1430 = vmatpush1.msra.mxu0 %v1427
      %1431 = vmatprep.subr.mxu0 0.0
      %1432 = vmatpush1.msra.mxu0 0.0
      %1433 = vmatprep.subr.mxu0 0.0
      %1434 = vmatpush1.msra.mxu0 0.0
      %1435 = vmatprep.subr.mxu0 0.0
      %1436 = vmatpush1.msra.mxu0 0.0
      %1437 = vmatprep.subr.mxu0 0.0
      %1438 = vmatpush1.msra.mxu0 0.0
      %1439 = vmatprep.subr.mxu0 0.0
      %1440 = vmatpush1.msra.mxu0 0.0
      %1441 = vmatprep.subr.mxu0 0.0
      %1442 = vmatpush1.msra.mxu0 0.0
      %1443 = vmatprep.subr.mxu0 0.0
      %1444 = vmatpush1.msra.mxu0 0.0
      %1445 = vmatprep.subr.mxu0 0.0
      %1446 = vmatpush1.msra.mxu0 0.0
      %1447 = vmatprep.subr.mxu0 0.0
      %1448 = vmatpush1.msra.mxu0 0.0
      %1449 = vmatprep.subr.mxu0 0.0
      %1450 = vmatpush1.msra.mxu0 0.0
      %1451 = vmatprep.subr.mxu0 0.0
      %1452 = vmatpush1.msra.mxu0 0.0
      %1453 = vmatprep.subr.mxu0 0.0
      %1454 = vmatpush1.msra.mxu0 0.0
      %1455 = vmatprep.subr.mxu0 0.0
      %1456 = vmatpush1.msra.mxu0 0.0
      %1457 = vmatprep.subr.mxu0 0.0
      %1458 = vmatpush1.msra.mxu0 0.0
      %1459 = vmatprep.subr.mxu0 0.0
      %1460 = vmatpush1.msra.mxu0 0.0
      %1461 = vmatprep.subr.mxu0 0.0
      %1462 = vmatpush1.msra.mxu0 0.0
      %1463 = vmatprep.subr.mxu0 0.0
      %1464 = vmatpush1.msra.mxu0 0.0
      %1465 = vmatprep.subr.mxu0 0.0
      %1466 = vmatpush1.msra.mxu0 0.0
      %1467 = vmatprep.subr.mxu0 0.0
      %1468 = vmatpush1.msra.mxu0 0.0
      %1469 = vmatprep.subr.mxu0 0.0
      %1470 = vmatpush1.msra.mxu0 0.0
      %1471 = vmatprep.subr.mxu0 0.0
      %1472 = vmatpush1.msra.mxu0 0.0
      %1473 = vmatprep.subr.mxu0 0.0
      %1474 = vmatpush1.msra.mxu0 0.0
      %1475 = vmatprep.subr.mxu0 0.0
      %1476 = vmatpush1.msra.mxu0 0.0
      %1477 = vmatprep.subr.mxu0 0.0
      %1478 = vmatpush1.msra.mxu0 0.0
      %1479 = vmatprep.subr.mxu0 0.0
      %1480 = vmatpush1.msra.mxu0 0.0
      %1481 = vmatprep.subr.mxu0 0.0
      %1482 = vmatpush1.msra.mxu0 0.0
      %1483 = vmatprep.subr.mxu0 0.0
      %1484 = vmatpush1.msra.mxu0 0.0
      %1485 = vmatprep.subr.mxu0 0.0
      %1486 = vmatpush1.msra.mxu0 0.0
      %1487 = vmatprep.subr.mxu0 0.0
      %1488 = vmatpush1.msra.mxu0 0.0
      %1489 = vmatprep.subr.mxu0 0.0
      %1490 = vmatpush1.msra.mxu0 0.0
      %1491 = vmatprep.subr.mxu0 0.0
      %1492 = vmatpush1.msra.mxu0 0.0
      %1493 = vmatprep.mubr.f32.mxu0 0.0
      %1494 = vmatmul.mubr.f32.gmra.mrb[0].mxu0 %v1414
      %v1495 = vpop.f32.mrb[0].mxu0
      %v1496 = vadd.f32 0.0, %v1495
      %v1497 = vpop.f32.mrb[0].mxu0
      %1498 = vmatprep.mubr.f32.mxu0 0.0
      %1499 = vmatmul.mubr.f32.gmra.mrb[0].mxu0 %v1417
      %v1500 = vpop.f32.mrb[0].mxu0
      %v1501 = vadd.f32 0.0, %v1500
      %v1502 = vpop.f32.mrb[0].mxu0
      %1503 = vmatprep.mubr.f32.mxu0 0.0
      %1504 = vmatmul.mubr.f32.gmra.mrb[0].mxu0 %v1420
      %v1505 = vpop.f32.mrb[0].mxu0
      %v1506 = vadd.f32 0.0, %v1505
      %v1507 = vpop.f32.mrb[0].mxu0
      %1508 = vmatprep.mubr.f32.mxu0 0.0
      %1509 = vmatmul.mubr.f32.gmra.mrb[0].mxu0 %v1423
      %v1510 = vpop.f32.mrb[0].mxu0
      %v1511 = vadd.f32 0.0, %v1510
      %v1512 = vpop.f32.mrb[0].mxu0
      %1513 = vdwg.mxu0
      %vm1514 = vcmask 261120
      %v1516 = vsel %vm1514, %v1400, 0
      %v1519 = vsel %vm1514, %v1401, 0
      %v1522 = vsel %vm1514, %v1402, 0
      %v1525 = vsel %vm1514, %v1403, 0
      %v1528 = vsel %vm1514, %v1397, 0
      %v1531 = vsel %vm1514, %v1398, 0
      %1533 = vmatprep.subr.mxu0 0.0
      %1534 = vmatpush1.xpose.msra.mxu0 %v1528
      %1535 = vmatprep.subr.mxu0 0.0
      %1536 = vmatpush1.xpose.msra.mxu0 %v1531
      %1537 = vmatprep.subr.mxu0 0.0
      %1538 = vmatpush1.xpose.msra.mxu0 0.0
      %1539 = vmatprep.subr.mxu0 0.0
      %1540 = vmatpush1.xpose.msra.mxu0 0.0
      %1541 = vmatprep.subr.mxu0 0.0
      %1542 = vmatpush1.xpose.msra.mxu0 0.0
      %1543 = vmatprep.subr.mxu0 0.0
      %1544 = vmatpush1.xpose.msra.mxu0 0.0
      %1545 = vmatprep.subr.mxu0 0.0
      %1546 = vmatpush1.xpose.msra.mxu0 0.0
      %1547 = vmatprep.subr.mxu0 0.0
      %1548 = vmatpush1.xpose.msra.mxu0 0.0
      %1549 = vmatprep.subr.mxu0 0.0
      %1550 = vmatpush1.xpose.msra.mxu0 0.0
      %1551 = vmatprep.subr.mxu0 0.0
      %1552 = vmatpush1.xpose.msra.mxu0 0.0
      %1553 = vmatprep.subr.mxu0 0.0
      %1554 = vmatpush1.xpose.msra.mxu0 0.0
      %1555 = vmatprep.subr.mxu0 0.0
      %1556 = vmatpush1.xpose.msra.mxu0 0.0
      %1557 = vmatprep.subr.mxu0 0.0
      %1558 = vmatpush1.xpose.msra.mxu0 0.0
      %1559 = vmatprep.subr.mxu0 0.0
      %1560 = vmatpush1.xpose.msra.mxu0 0.0
      %1561 = vmatprep.subr.mxu0 0.0
      %1562 = vmatpush1.xpose.msra.mxu0 0.0
      %1563 = vmatprep.subr.mxu0 0.0
      %1564 = vmatpush1.xpose.msra.mxu0 0.0
      %1565 = vmatprep.subr.mxu0 0.0
      %1566 = vmatpush1.xpose.msra.mxu0 0.0
      %1567 = vmatprep.subr.mxu0 0.0
      %1568 = vmatpush1.xpose.msra.mxu0 0.0
      %1569 = vmatprep.subr.mxu0 0.0
      %1570 = vmatpush1.xpose.msra.mxu0 0.0
      %1571 = vmatprep.subr.mxu0 0.0
      %1572 = vmatpush1.xpose.msra.mxu0 0.0
      %1573 = vmatprep.subr.mxu0 0.0
      %1574 = vmatpush1.xpose.msra.mxu0 0.0
      %1575 = vmatprep.subr.mxu0 0.0
      %1576 = vmatpush1.xpose.msra.mxu0 0.0
      %1577 = vmatprep.subr.mxu0 0.0
      %1578 = vmatpush1.xpose.msra.mxu0 0.0
      %1579 = vmatprep.subr.mxu0 0.0
      %1580 = vmatpush1.xpose.msra.mxu0 0.0
      %1581 = vmatprep.subr.mxu0 0.0
      %1582 = vmatpush1.xpose.msra.mxu0 0.0
      %1583 = vmatprep.subr.mxu0 0.0
      %1584 = vmatpush1.xpose.msra.mxu0 0.0
      %1585 = vmatprep.subr.mxu0 0.0
      %1586 = vmatpush1.xpose.msra.mxu0 0.0
      %1587 = vmatprep.subr.mxu0 0.0
      %1588 = vmatpush1.xpose.msra.mxu0 0.0
      %1589 = vmatprep.subr.mxu0 0.0
      %1590 = vmatpush1.xpose.msra.mxu0 0.0
      %1591 = vmatprep.subr.mxu0 0.0
      %1592 = vmatpush1.xpose.msra.mxu0 0.0
      %1593 = vmatprep.subr.mxu0 0.0
      %1594 = vmatpush1.xpose.msra.mxu0 0.0
      %1595 = vmatprep.subr.mxu0 0.0
      %1596 = vmatpush1.xpose.msra.mxu0 0.0
      %1597 = vmatprep.mubr.f32.mxu0 0.0
      %1598 = vmatmul.mubr.f32.gmra.mrb[0].mxu0 %v1516
      %v1599 = vpop.f32.mrb[0].mxu0
      %v1600 = vadd.f32 %v1496, %v1599
      %v1601 = vpop.f32.mrb[0].mxu0
      %1602 = vmatprep.mubr.f32.mxu0 0.0
      %1603 = vmatmul.mubr.f32.gmra.mrb[0].mxu0 %v1519
      %v1604 = vpop.f32.mrb[0].mxu0
      %v1605 = vadd.f32 %v1501, %v1604
      %v1606 = vpop.f32.mrb[0].mxu0
      %1607 = vmatprep.mubr.f32.mxu0 0.0
      %1608 = vmatmul.mubr.f32.gmra.mrb[0].mxu0 %v1522
      %v1609 = vpop.f32.mrb[0].mxu0
      %v1610 = vadd.f32 %v1506, %v1609
      %v1611 = vpop.f32.mrb[0].mxu0
      %1612 = vmatprep.mubr.f32.mxu0 0.0
      %1613 = vmatmul.mubr.f32.gmra.mrb[0].mxu0 %v1525
      %v1614 = vpop.f32.mrb[0].mxu0
      %v1615 = vadd.f32 %v1511, %v1614
      %v1616 = vpop.f32.mrb[0].mxu0
      %1617 = vdwg.mxu0
      %1619 = vset.pattern.permute.xlu0 0
      %1620 = vperm.xlu0 %1619, %v1408
      %v1621 = vpop.permute.xlu0 %1620
      %1624 = vset.pattern.permute.xlu0 0
      %1625 = vperm.xlu0 %1624, %v1409
      %v1626 = vpop.permute.xlu0 %1625
      %1629 = vset.pattern.permute.xlu0 0
      %1630 = vperm.xlu0 %1629, %v1410
      %v1631 = vpop.permute.xlu0 %1630
      %1634 = vset.pattern.permute.xlu0 0
      %1635 = vperm.xlu0 %1634, %v1411
      %v1636 = vpop.permute.xlu0 %1635
      %v1638 = vadd.f32 %v1600, %v1621
      %v1639 = vadd.f32 %v1605, %v1626
      %v1640 = vadd.f32 %v1610, %v1631
      %v1641 = vadd.f32 %v1615, %v1636
      %v1642 = vmax.f32 %v1638, 0.0
      %v1643 = vmax.f32 %v1639, 0.0
      %v1644 = vmax.f32 %v1640, 0.0
      %v1645 = vmax.f32 %v1641, 0.0
      %1646 = vst.msk [vmem:[%s487] sm:$0xff] %vm723, %v1642
      %1647 = vst.msk [vmem:[%s487 + $0x8] sm:$0xff] %vm723, %v1643
      %1648 = vst.msk [vmem:[%s487 + $0x10] sm:$0xff] %vm723, %v1644
      %1649 = vst.msk [vmem:[%s487 + $0x18] sm:$0xff] %vm723, %v1645
      %p1650 = scmp.lt.s32.totalorder %s26, 1
      %s1651 = scalar_select %p1650, %s26, 1
      %p1652 = scmp.lt.s32.totalorder %s27, 0
      %s1653 = scalar_select %p1652, %s27, 0
      %s1654 = smul.addr %s1651, 4
      %s1655 = sadd.s32 %s1653, %s1654
      %s1656 = smul.addr %s1655, 8
      %s1657 = scalar_lea.vmem %s11, %s1656
      // Predicated region
      $region65: #{tpu_custom_call.1} parent=63 // pred_check
        %p1658 = pneg %p309
      $region66: #{tpu_custom_call.1} parent=63 // pred_check_branch
        %1660 = sbr.rel (%p1658) target = $region68
      $region67: #{tpu_custom_call.1} parent=63 // pred_region
        _
      $region68: #{tpu_custom_call.1} parent=63 // pred_fallthru
        _
    $region64: #{tpu_custom_call.1} parent=5 // pred_fallthru
      _
    %p1661 = scmp.le.s32.totalorder 2, %s17
    // Predicated region
    $region69: #{tpu_custom_call.1} parent=5 // pred_check
      %p1662 = pneg %p1661
    $region70: #{tpu_custom_call.1} parent=5 // pred_check_branch
      %1664 = sbr.rel (%p1662) target = $region72
    $region71: #{tpu_custom_call.1} parent=5 // pred_region
      %s1665 = ssub.s32 %s17, 2
      // Predicated region
      $region73: #{tpu_custom_call.1} parent=71 // pred_check
        %p1666 = pneg %p315
      $region74: #{tpu_custom_call.1} parent=71 // pred_check_branch
        %1668 = sbr.rel (%p1666) target = $region76
      $region75: #{tpu_custom_call.1} parent=71 // pred_region
        %p1669 = scmp.lt.s32.totalorder %s28, 1
        %s1670 = scalar_select %p1669, %s28, 1
        %p1671 = scmp.lt.s32.totalorder %s29, 0
        %s1672 = scalar_select %p1671, %s29, 0
        %s1673 = smul.addr %s1670, 4
        %s1674 = sadd.s32 %s1672, %s1673
        %s1675 = smul.addr %s1674, 8
        %s1676 = scalar_lea.vmem %s11, %s1675
      $region76: #{tpu_custom_call.1} parent=71 // pred_fallthru
        _
    $region72: #{tpu_custom_call.1} parent=5 // pred_fallthru
      _
  $region6: #{tpu_custom_call.1} parent=0 // loop_footer
    %s21 = sadd.s32 1, %s17
  $region7: #{tpu_custom_call.1} parent=0 // loop_footer_branch
    %16 = sbr.rel target = $region3
  $region8: #{tpu_custom_call.1} parent=0 // loop_exit
    _

</llo_original>
